<compile_context>
chip_gen: v7x
topology: tpu7x:2x2x1
jax: 0.10.0
libtpu: 0.0.40
codegen_flags: <defaults>
</compile_context>

<pallas_src>
import math
import functools

import jax
import jax.numpy as jnp
from jax.experimental import pallas as pl
from jax.experimental.pallas import tpu as pltpu


# ---------------------------------------------------------------------------
# Kernel: full encoder, one layer per grid step, activation resident in o_ref
# ---------------------------------------------------------------------------
def _encoder_kernel(n_head, x_ref, pos_ref, wqkv_ref, bqkv_ref,
                    wo_ref, bo_ref, gamma_ref, beta_ref, o_ref):
    layer = pl.program_id(1)

    # Layer 0: transformer embedding (x + positional encoding; dropout = id).
    @pl.when(layer == 0)
    def _():
        o_ref[...] = x_ref[...] + pos_ref[...]

    x = o_ref[...]                          # (B, S, D) f32, resident across layers
    B, S, D = x.shape
    H = n_head
    dh = D // H

    x2d = x.reshape(B * S, D)
    xb = x2d.astype(jnp.bfloat16)

    # Fused QKV projection: one lane-dense (B*S, 3D) bf16 matmul with K=D.
    # 1/sqrt(dh) is pre-folded into the q weight columns / bias at prep time.
    qkv = (jnp.dot(xb, wqkv_ref[0], preferred_element_type=jnp.float32)
           + bqkv_ref[0])                   # (B*S, 3D) f32
    # Column layout: [q_h0 .. q_h{H-1} | k_h0 .. | v_h0 ..], each head dh wide.

    # Per-head scaled dot-product attention (softmax stats in f32).
    # TODO(synk): batch the two einsums over B*H in a single dot_general once
    # multi-batch-dim dot_general lowering is relied upon; heads are looped here.
    av_parts = []
    for h in range(H):
        qh = qkv[:, h * dh:(h + 1) * dh].reshape(B, S, dh).astype(jnp.bfloat16)
        kh = qkv[:, D + h * dh:D + (h + 1) * dh].reshape(B, S, dh).astype(jnp.bfloat16)
        vh = qkv[:, 2 * D + h * dh:2 * D + (h + 1) * dh].reshape(B, S, dh).astype(jnp.bfloat16)

        s = jnp.einsum('bqd,bkd->bqk', qh, kh,
                       preferred_element_type=jnp.float32)       # (B, S, S) f32
        s = s - jnp.max(s, axis=-1, keepdims=True)
        p = jnp.exp(s)
        p = p * pl.reciprocal(jnp.sum(p, axis=-1, keepdims=True), approx=True)
        avh = jnp.einsum('bqk,bkd->bqd', p.astype(jnp.bfloat16), vh,
                         preferred_element_type=jnp.float32)     # (B, S, dh) f32
        av_parts.append(avh.reshape(B * S, dh))

    av = jnp.concatenate(av_parts, axis=-1)                      # (B*S, D) f32

    # Output projection: single K=D matmul, lane-dense (B*S, D) output.
    out = (jnp.dot(av.astype(jnp.bfloat16), wo_ref[0],
                   preferred_element_type=jnp.float32) + bo_ref[0])

    # Residual + LayerNorm (biased variance, eps=1e-12); rsqrt on the EUP.
    res = out.reshape(B, S, D) + x
    mean = jnp.mean(res, axis=-1, keepdims=True)
    var = jnp.mean((res - mean) ** 2, axis=-1, keepdims=True)
    normed = (res - mean) * jax.lax.rsqrt(var + 1e-12)
    o_ref[...] = (gamma_ref[0] * normed + beta_ref[0]).astype(o_ref.dtype)


# ---------------------------------------------------------------------------
# Parameter construction / one-time preparation (hoisted out of the forward)
# ---------------------------------------------------------------------------
def positional_encoding(max_len, d_model):
    pos = jnp.arange(max_len, dtype=jnp.float32)[:, None]
    _2i = jnp.arange(0, d_model, 2, dtype=jnp.float32)
    angle = pos / (10000.0 ** (_2i / d_model))
    enc = jnp.zeros((max_len, d_model), dtype=jnp.float32)
    enc = enc.at[:, 0::2].set(jnp.sin(angle))
    enc = enc.at[:, 1::2].set(jnp.cos(angle))
    return enc


def init_layer_params(key, d_model):
    ks = jax.random.split(key, 4)
    bound = 1.0 / math.sqrt(d_model)

    def lin(k):
        kw, kb = jax.random.split(k)
        w = jax.random.uniform(kw, (d_model, d_model), jnp.float32, -bound, bound)
        b = jax.random.uniform(kb, (1, d_model), jnp.float32, -bound, bound)
        return w, b

    wq, bq = lin(ks[0])
    wk, bk = lin(ks[1])
    wv, bv = lin(ks[2])
    wo, bo = lin(ks[3])
    return dict(wq=wq, bq=bq, wk=wk, bk=bk, wv=wv, bv=bv, wo=wo, bo=bo,
                gamma=jnp.ones((1, d_model), jnp.float32),
                beta=jnp.zeros((1, d_model), jnp.float32))


def prepare_encoder_params(layer_params, n_head):
    """Runs ONCE at init: stack layers, fuse QKV, fold 1/sqrt(dh), cast to bf16."""
    d_model = layer_params[0]['wq'].shape[0]
    dh = d_model // n_head
    scale = 1.0 / math.sqrt(dh)

    wqkv = jnp.stack([jnp.concatenate([p['wq'] * scale, p['wk'], p['wv']], axis=1)
                      for p in layer_params]).astype(jnp.bfloat16)        # (L, D, 3D)
    bqkv = jnp.stack([jnp.concatenate([p['bq'] * scale, p['bk'], p['bv']], axis=1)
                      for p in layer_params])                             # (L, 1, 3D) f32
    wo = jnp.stack([p['wo'] for p in layer_params]).astype(jnp.bfloat16)  # (L, D, D)
    bo = jnp.stack([p['bo'] for p in layer_params])                       # (L, 1, D)
    gamma = jnp.stack([p['gamma'] for p in layer_params])                 # (L, 1, D)
    beta = jnp.stack([p['beta'] for p in layer_params])                   # (L, 1, D)
    return dict(wqkv=wqkv, bqkv=bqkv, wo=wo, bo=bo, gamma=gamma, beta=beta)


# ---------------------------------------------------------------------------
# Wrapper
# ---------------------------------------------------------------------------
def encoder_forward(x, pos_enc, params, n_head, batch_blocks=1):
    B, S, D = x.shape
    L = params['wqkv'].shape[0]
    assert B % batch_blocks == 0
    Bt = B // batch_blocks

    kern = functools.partial(_encoder_kernel, n_head)

    # Activation block: constant index across the layer axis => resident in VMEM.
    act_spec = pl.BlockSpec((Bt, S, D), lambda b, l: (b, 0, 0))
    pos_spec = pl.BlockSpec((S, D), lambda b, l: (0, 0))
    # Per-layer weight blocks (streamed / double-buffered along the layer axis).
    wqkv_spec = pl.BlockSpec((1, D, 3 * D), lambda b, l: (l, 0, 0))
    bqkv_spec = pl.BlockSpec((1, 1, 3 * D), lambda b, l: (l, 0, 0))
    wo_spec = pl.BlockSpec((1, D, D), lambda b, l: (l, 0, 0))
    vec_spec = pl.BlockSpec((1, 1, D), lambda b, l: (l, 0, 0))

    return pl.pallas_call(
        kern,
        out_shape=jax.ShapeDtypeStruct((B, S, D), x.dtype),
        grid=(batch_blocks, L),
        in_specs=[act_spec, pos_spec,
                  wqkv_spec, bqkv_spec,     # fused W_qkv, b_qkv (scale folded)
                  wo_spec, vec_spec,        # w_concat, b_concat
                  vec_spec, vec_spec],      # gamma, beta
        out_specs=act_spec,
        compiler_params=pltpu.CompilerParams(
            # Batch blocks are independent (megacore on v7x when >1);
            # the layer axis is a sequential dependency on the resident output.
            dimension_semantics=("parallel", "arbitrary"),
            vmem_limit_bytes=32 * 1024 * 1024),
    )(x, pos_enc[:S],
      params['wqkv'], params['bqkv'],
      params['wo'], params['bo'],
      params['gamma'], params['beta'])


# ---------------------------------------------------------------------------
# Main
# ---------------------------------------------------------------------------
if __name__ == "__main__":
    max_len = 16
    d_model = 32
    n_head = 4
    n_layers = 2
    B, S = 2, 8

    key = jax.random.PRNGKey(0)
    kx, kp = jax.random.split(key)
    x = jax.random.normal(kx, (B, S, d_model), dtype=jnp.float32)

    layer_keys = jax.random.split(kp, n_layers)
    layer_params = [init_layer_params(layer_keys[i], d_model)
                    for i in range(n_layers)]
    pos_enc = positional_encoding(max_len, d_model)

    # One-time parameter preparation (stack / fuse / fold / cast) at init.
    params = prepare_encoder_params(layer_params, n_head)

    out = encoder_forward(x, pos_enc, params, n_head)
    out = jax.block_until_ready(out)
    assert out.shape == (B, S, d_model)
    print("KERNEL_OK")
</pallas_src>

<mosaic_0001>
module attributes {stable_mosaic.version = 11 : i64} {
  func.func @_encoder_kernel(%arg0: i32, %arg1: i32, %arg2: memref<2x8x32xf32, #tpu.memory_space<vmem>>, %arg3: memref<8x32xf32, #tpu.memory_space<vmem>>, %arg4: memref<1x32x96xbf16, #tpu.memory_space<vmem>>, %arg5: memref<1x1x96xf32, #tpu.memory_space<vmem>>, %arg6: memref<1x32x32xbf16, #tpu.memory_space<vmem>>, %arg7: memref<1x1x32xf32, #tpu.memory_space<vmem>>, %arg8: memref<1x1x32xf32, #tpu.memory_space<vmem>>, %arg9: memref<1x1x32xf32, #tpu.memory_space<vmem>>, %arg10: memref<2x8x32xf32, #tpu.memory_space<vmem>>) attributes {dimension_semantics = [#tpu.dimension_semantics<parallel>, #tpu.dimension_semantics<arbitrary>], iteration_bounds = array<i64: 1, 2>, scalar_prefetch = 0 : i64, scratch_operands = 0 : i64, tpu.core_type = #tpu.core_type<tc>, window_params = [{transform_indices = @transform_0, window_bounds = array<i64: 2, 8, 32>}, {pipeline_mode = #tpu.pipeline_mode<synchronous>, transform_indices = @transform_1, window_bounds = array<i64: 8, 32>}, {transform_indices = @transform_2, window_bounds = array<i64: 1, 32, 96>}, {transform_indices = @transform_3, window_bounds = array<i64: 1, 1, 96>}, {transform_indices = @transform_4, window_bounds = array<i64: 1, 32, 32>}, {transform_indices = @transform_5, window_bounds = array<i64: 1, 1, 32>}, {transform_indices = @transform_6, window_bounds = array<i64: 1, 1, 32>}, {transform_indices = @transform_7, window_bounds = array<i64: 1, 1, 32>}, {transform_indices = @transform_8, window_bounds = array<i64: 2, 8, 32>}]} {
    %c0_i32 = arith.constant 0 : i32
    %0 = arith.cmpi eq, %arg1, %c0_i32 : i32
    %1 = arith.extui %0 : i1 to i32
    %c0_i32_0 = arith.constant 0 : i32
    %2 = arith.cmpi ne, %1, %c0_i32_0 : i32
    scf.if %2 {
      %c0_46 = arith.constant 0 : index
      %c0_47 = arith.constant 0 : index
      %c0_48 = arith.constant 0 : index
      %145 = vector.load %arg2[%c0_46, %c0_47, %c0_48] : memref<2x8x32xf32, #tpu.memory_space<vmem>>, vector<2x8x32xf32>
      %c0_49 = arith.constant 0 : index
      %c0_50 = arith.constant 0 : index
      %146 = vector.load %arg3[%c0_49, %c0_50] : memref<8x32xf32, #tpu.memory_space<vmem>>, vector<8x32xf32>
      %147 = vector.shape_cast %146 : vector<8x32xf32> to vector<1x8x32xf32>
      %148 = vector.broadcast %147 : vector<1x8x32xf32> to vector<2x8x32xf32>
      %149 = arith.addf %145, %148 : vector<2x8x32xf32>
      %c0_51 = arith.constant 0 : index
      %c0_52 = arith.constant 0 : index
      %c0_53 = arith.constant 0 : index
      %150 = vector.load %arg10[%c0_51, %c0_52, %c0_53] : memref<2x8x32xf32, #tpu.memory_space<vmem>>, vector<2x8x32xf32>
      tpu.vector_store %arg10[%c0_51, %c0_52, %c0_53], %149 {strides = array<i32>} : memref<2x8x32xf32, #tpu.memory_space<vmem>>, vector<2x8x32xf32>,
    } else {
    }
    %c0 = arith.constant 0 : index
    %c0_1 = arith.constant 0 : index
    %c0_2 = arith.constant 0 : index
    %3 = vector.load %arg10[%c0, %c0_1, %c0_2] : memref<2x8x32xf32, #tpu.memory_space<vmem>>, vector<2x8x32xf32>
    %4 = vector.shape_cast %3 : vector<2x8x32xf32> to vector<16x32xf32>
    %5 = arith.truncf %4 : vector<16x32xf32> to vector<16x32xbf16>
    %c0_3 = arith.constant 0 : index
    %c0_4 = arith.constant 0 : index
    %c0_5 = arith.constant 0 : index
    %6 = vector.load %arg4[%c0_3, %c0_4, %c0_5] : memref<1x32x96xbf16, #tpu.memory_space<vmem>>, vector<1x32x96xbf16>
    %7 = vector.shape_cast %6 : vector<1x32x96xbf16> to vector<32x96xbf16>
    %cst = arith.constant dense<0.000000e+00> : vector<16x96xf32>
    %8 = tpu.matmul %5, %7, %cst {dimension_numbers = #tpu.dot_dimension_numbers<[1], [0], [0], [1], [0, 0, 1, 1], [], []>} : vector<16x32xbf16>, vector<32x96xbf16>, vector<16x96xf32> -> vector<16x96xf32>
    %c0_6 = arith.constant 0 : index
    %c0_7 = arith.constant 0 : index
    %c0_8 = arith.constant 0 : index
    %9 = vector.load %arg5[%c0_6, %c0_7, %c0_8] : memref<1x1x96xf32, #tpu.memory_space<vmem>>, vector<1x1x96xf32>
    %10 = vector.shape_cast %9 : vector<1x1x96xf32> to vector<1x96xf32>
    %11 = vector.broadcast %10 : vector<1x96xf32> to vector<16x96xf32>
    %12 = arith.addf %8, %11 : vector<16x96xf32>
    %13 = vector.extract_strided_slice %12 {offsets = [0, 0], sizes = [16, 8], strides = [1, 1]} : vector<16x96xf32> to vector<16x8xf32>
    %14 = vector.shape_cast %13 : vector<16x8xf32> to vector<2x8x8xf32>
    %15 = arith.truncf %14 : vector<2x8x8xf32> to vector<2x8x8xbf16>
    %16 = vector.extract_strided_slice %12 {offsets = [0, 32], sizes = [16, 8], strides = [1, 1]} : vector<16x96xf32> to vector<16x8xf32>
    %17 = vector.shape_cast %16 : vector<16x8xf32> to vector<2x8x8xf32>
    %18 = arith.truncf %17 : vector<2x8x8xf32> to vector<2x8x8xbf16>
    %19 = vector.extract_strided_slice %12 {offsets = [0, 64], sizes = [16, 8], strides = [1, 1]} : vector<16x96xf32> to vector<16x8xf32>
    %20 = vector.shape_cast %19 : vector<16x8xf32> to vector<2x8x8xf32>
    %21 = arith.truncf %20 : vector<2x8x8xf32> to vector<2x8x8xbf16>
    "tpu.trace_start"() <{level = 10 : i32, message = "bqd,bkd->bqk"}> : () -> ()
    %cst_9 = arith.constant dense<0.000000e+00> : vector<2x8x8xf32>
    %22 = tpu.matmul %15, %18, %cst_9 {dimension_numbers = #tpu.dot_dimension_numbers<[2], [2], [1], [1], [0, 0, 0, 1, 1, 1], [0], [0]>} : vector<2x8x8xbf16>, vector<2x8x8xbf16>, vector<2x8x8xf32> -> vector<2x8x8xf32>
    "tpu.trace_stop"() : () -> ()
    %cst_10 = arith.constant dense<0xFF800000> : vector<2x8xf32>
    %23 = vector.multi_reduction <maximumf>, %22, %cst_10 [2] : vector<2x8x8xf32> to vector<2x8xf32>
    %24 = vector.shape_cast %23 : vector<2x8xf32> to vector<2x8x1xf32>
    %25 = vector.broadcast %24 : vector<2x8x1xf32> to vector<2x8x8xf32>
    %26 = arith.subf %22, %25 : vector<2x8x8xf32>
    %27 = math.exp %26 : vector<2x8x8xf32>
    %cst_11 = arith.constant dense<0.000000e+00> : vector<2x8xf32>
    %28 = vector.multi_reduction <add>, %27, %cst_11 [2] : vector<2x8x8xf32> to vector<2x8xf32>
    %29 = vector.shape_cast %28 : vector<2x8xf32> to vector<2x8x1xf32>
    %30 = tpu.reciprocal %29 {approx = true} : vector<2x8x1xf32> -> vector<2x8x1xf32>
    %31 = vector.broadcast %30 : vector<2x8x1xf32> to vector<2x8x8xf32>
    %32 = arith.mulf %27, %31 : vector<2x8x8xf32>
    %33 = arith.truncf %32 : vector<2x8x8xf32> to vector<2x8x8xbf16>
    "tpu.trace_start"() <{level = 10 : i32, message = "bqk,bkd->bqd"}> : () -> ()
    %cst_12 = arith.constant dense<0.000000e+00> : vector<2x8x8xf32>
    %34 = tpu.matmul %33, %21, %cst_12 {dimension_numbers = #tpu.dot_dimension_numbers<[2], [1], [1], [2], [0, 0, 0, 1, 1, 2], [0], [0]>} : vector<2x8x8xbf16>, vector<2x8x8xbf16>, vector<2x8x8xf32> -> vector<2x8x8xf32>
    "tpu.trace_stop"() : () -> ()
    %35 = vector.shape_cast %34 : vector<2x8x8xf32> to vector<16x8xf32>
    %36 = vector.extract_strided_slice %12 {offsets = [0, 8], sizes = [16, 8], strides = [1, 1]} : vector<16x96xf32> to vector<16x8xf32>
    %37 = vector.shape_cast %36 : vector<16x8xf32> to vector<2x8x8xf32>
    %38 = arith.truncf %37 : vector<2x8x8xf32> to vector<2x8x8xbf16>
    %39 = vector.extract_strided_slice %12 {offsets = [0, 40], sizes = [16, 8], strides = [1, 1]} : vector<16x96xf32> to vector<16x8xf32>
    %40 = vector.shape_cast %39 : vector<16x8xf32> to vector<2x8x8xf32>
    %41 = arith.truncf %40 : vector<2x8x8xf32> to vector<2x8x8xbf16>
    %42 = vector.extract_strided_slice %12 {offsets = [0, 72], sizes = [16, 8], strides = [1, 1]} : vector<16x96xf32> to vector<16x8xf32>
    %43 = vector.shape_cast %42 : vector<16x8xf32> to vector<2x8x8xf32>
    %44 = arith.truncf %43 : vector<2x8x8xf32> to vector<2x8x8xbf16>
    "tpu.trace_start"() <{level = 10 : i32, message = "bqd,bkd->bqk"}> : () -> ()
    %cst_13 = arith.constant dense<0.000000e+00> : vector<2x8x8xf32>
    %45 = tpu.matmul %38, %41, %cst_13 {dimension_numbers = #tpu.dot_dimension_numbers<[2], [2], [1], [1], [0, 0, 0, 1, 1, 1], [0], [0]>} : vector<2x8x8xbf16>, vector<2x8x8xbf16>, vector<2x8x8xf32> -> vector<2x8x8xf32>
    "tpu.trace_stop"() : () -> ()
    %cst_14 = arith.constant dense<0xFF800000> : vector<2x8xf32>
    %46 = vector.multi_reduction <maximumf>, %45, %cst_14 [2] : vector<2x8x8xf32> to vector<2x8xf32>
    %47 = vector.shape_cast %46 : vector<2x8xf32> to vector<2x8x1xf32>
    %48 = vector.broadcast %47 : vector<2x8x1xf32> to vector<2x8x8xf32>
    %49 = arith.subf %45, %48 : vector<2x8x8xf32>
    %50 = math.exp %49 : vector<2x8x8xf32>
    %cst_15 = arith.constant dense<0.000000e+00> : vector<2x8xf32>
    %51 = vector.multi_reduction <add>, %50, %cst_15 [2] : vector<2x8x8xf32> to vector<2x8xf32>
    %52 = vector.shape_cast %51 : vector<2x8xf32> to vector<2x8x1xf32>
    %53 = tpu.reciprocal %52 {approx = true} : vector<2x8x1xf32> -> vector<2x8x1xf32>
    %54 = vector.broadcast %53 : vector<2x8x1xf32> to vector<2x8x8xf32>
    %55 = arith.mulf %50, %54 : vector<2x8x8xf32>
    %56 = arith.truncf %55 : vector<2x8x8xf32> to vector<2x8x8xbf16>
    "tpu.trace_start"() <{level = 10 : i32, message = "bqk,bkd->bqd"}> : () -> ()
    %cst_16 = arith.constant dense<0.000000e+00> : vector<2x8x8xf32>
    %57 = tpu.matmul %56, %44, %cst_16 {dimension_numbers = #tpu.dot_dimension_numbers<[2], [1], [1], [2], [0, 0, 0, 1, 1, 2], [0], [0]>} : vector<2x8x8xbf16>, vector<2x8x8xbf16>, vector<2x8x8xf32> -> vector<2x8x8xf32>
    "tpu.trace_stop"() : () -> ()
    %58 = vector.shape_cast %57 : vector<2x8x8xf32> to vector<16x8xf32>
    %59 = vector.extract_strided_slice %12 {offsets = [0, 16], sizes = [16, 8], strides = [1, 1]} : vector<16x96xf32> to vector<16x8xf32>
    %60 = vector.shape_cast %59 : vector<16x8xf32> to vector<2x8x8xf32>
    %61 = arith.truncf %60 : vector<2x8x8xf32> to vector<2x8x8xbf16>
    %62 = vector.extract_strided_slice %12 {offsets = [0, 48], sizes = [16, 8], strides = [1, 1]} : vector<16x96xf32> to vector<16x8xf32>
    %63 = vector.shape_cast %62 : vector<16x8xf32> to vector<2x8x8xf32>
    %64 = arith.truncf %63 : vector<2x8x8xf32> to vector<2x8x8xbf16>
    %65 = vector.extract_strided_slice %12 {offsets = [0, 80], sizes = [16, 8], strides = [1, 1]} : vector<16x96xf32> to vector<16x8xf32>
    %66 = vector.shape_cast %65 : vector<16x8xf32> to vector<2x8x8xf32>
    %67 = arith.truncf %66 : vector<2x8x8xf32> to vector<2x8x8xbf16>
    "tpu.trace_start"() <{level = 10 : i32, message = "bqd,bkd->bqk"}> : () -> ()
    %cst_17 = arith.constant dense<0.000000e+00> : vector<2x8x8xf32>
    %68 = tpu.matmul %61, %64, %cst_17 {dimension_numbers = #tpu.dot_dimension_numbers<[2], [2], [1], [1], [0, 0, 0, 1, 1, 1], [0], [0]>} : vector<2x8x8xbf16>, vector<2x8x8xbf16>, vector<2x8x8xf32> -> vector<2x8x8xf32>
    "tpu.trace_stop"() : () -> ()
    %cst_18 = arith.constant dense<0xFF800000> : vector<2x8xf32>
    %69 = vector.multi_reduction <maximumf>, %68, %cst_18 [2] : vector<2x8x8xf32> to vector<2x8xf32>
    %70 = vector.shape_cast %69 : vector<2x8xf32> to vector<2x8x1xf32>
    %71 = vector.broadcast %70 : vector<2x8x1xf32> to vector<2x8x8xf32>
    %72 = arith.subf %68, %71 : vector<2x8x8xf32>
    %73 = math.exp %72 : vector<2x8x8xf32>
    %cst_19 = arith.constant dense<0.000000e+00> : vector<2x8xf32>
    %74 = vector.multi_reduction <add>, %73, %cst_19 [2] : vector<2x8x8xf32> to vector<2x8xf32>
    %75 = vector.shape_cast %74 : vector<2x8xf32> to vector<2x8x1xf32>
    %76 = tpu.reciprocal %75 {approx = true} : vector<2x8x1xf32> -> vector<2x8x1xf32>
    %77 = vector.broadcast %76 : vector<2x8x1xf32> to vector<2x8x8xf32>
    %78 = arith.mulf %73, %77 : vector<2x8x8xf32>
    %79 = arith.truncf %78 : vector<2x8x8xf32> to vector<2x8x8xbf16>
    "tpu.trace_start"() <{level = 10 : i32, message = "bqk,bkd->bqd"}> : () -> ()
    %cst_20 = arith.constant dense<0.000000e+00> : vector<2x8x8xf32>
    %80 = tpu.matmul %79, %67, %cst_20 {dimension_numbers = #tpu.dot_dimension_numbers<[2], [1], [1], [2], [0, 0, 0, 1, 1, 2], [0], [0]>} : vector<2x8x8xbf16>, vector<2x8x8xbf16>, vector<2x8x8xf32> -> vector<2x8x8xf32>
    "tpu.trace_stop"() : () -> ()
    %81 = vector.shape_cast %80 : vector<2x8x8xf32> to vector<16x8xf32>
    %82 = vector.extract_strided_slice %12 {offsets = [0, 24], sizes = [16, 8], strides = [1, 1]} : vector<16x96xf32> to vector<16x8xf32>
    %83 = vector.shape_cast %82 : vector<16x8xf32> to vector<2x8x8xf32>
    %84 = arith.truncf %83 : vector<2x8x8xf32> to vector<2x8x8xbf16>
    %85 = vector.extract_strided_slice %12 {offsets = [0, 56], sizes = [16, 8], strides = [1, 1]} : vector<16x96xf32> to vector<16x8xf32>
    %86 = vector.shape_cast %85 : vector<16x8xf32> to vector<2x8x8xf32>
    %87 = arith.truncf %86 : vector<2x8x8xf32> to vector<2x8x8xbf16>
    %88 = vector.extract_strided_slice %12 {offsets = [0, 88], sizes = [16, 8], strides = [1, 1]} : vector<16x96xf32> to vector<16x8xf32>
    %89 = vector.shape_cast %88 : vector<16x8xf32> to vector<2x8x8xf32>
    %90 = arith.truncf %89 : vector<2x8x8xf32> to vector<2x8x8xbf16>
    "tpu.trace_start"() <{level = 10 : i32, message = "bqd,bkd->bqk"}> : () -> ()
    %cst_21 = arith.constant dense<0.000000e+00> : vector<2x8x8xf32>
    %91 = tpu.matmul %84, %87, %cst_21 {dimension_numbers = #tpu.dot_dimension_numbers<[2], [2], [1], [1], [0, 0, 0, 1, 1, 1], [0], [0]>} : vector<2x8x8xbf16>, vector<2x8x8xbf16>, vector<2x8x8xf32> -> vector<2x8x8xf32>
    "tpu.trace_stop"() : () -> ()
    %cst_22 = arith.constant dense<0xFF800000> : vector<2x8xf32>
    %92 = vector.multi_reduction <maximumf>, %91, %cst_22 [2] : vector<2x8x8xf32> to vector<2x8xf32>
    %93 = vector.shape_cast %92 : vector<2x8xf32> to vector<2x8x1xf32>
    %94 = vector.broadcast %93 : vector<2x8x1xf32> to vector<2x8x8xf32>
    %95 = arith.subf %91, %94 : vector<2x8x8xf32>
    %96 = math.exp %95 : vector<2x8x8xf32>
    %cst_23 = arith.constant dense<0.000000e+00> : vector<2x8xf32>
    %97 = vector.multi_reduction <add>, %96, %cst_23 [2] : vector<2x8x8xf32> to vector<2x8xf32>
    %98 = vector.shape_cast %97 : vector<2x8xf32> to vector<2x8x1xf32>
    %99 = tpu.reciprocal %98 {approx = true} : vector<2x8x1xf32> -> vector<2x8x1xf32>
    %100 = vector.broadcast %99 : vector<2x8x1xf32> to vector<2x8x8xf32>
    %101 = arith.mulf %96, %100 : vector<2x8x8xf32>
    %102 = arith.truncf %101 : vector<2x8x8xf32> to vector<2x8x8xbf16>
    "tpu.trace_start"() <{level = 10 : i32, message = "bqk,bkd->bqd"}> : () -> ()
    %cst_24 = arith.constant dense<0.000000e+00> : vector<2x8x8xf32>
    %103 = tpu.matmul %102, %90, %cst_24 {dimension_numbers = #tpu.dot_dimension_numbers<[2], [1], [1], [2], [0, 0, 0, 1, 1, 2], [0], [0]>} : vector<2x8x8xbf16>, vector<2x8x8xbf16>, vector<2x8x8xf32> -> vector<2x8x8xf32>
    "tpu.trace_stop"() : () -> ()
    %104 = vector.shape_cast %103 : vector<2x8x8xf32> to vector<16x8xf32>
    %105 = tpu.concatenate %35, %58, %81, %104 in 1 : vector<16x8xf32>, vector<16x8xf32>, vector<16x8xf32>, vector<16x8xf32> -> vector<16x32xf32>
    %106 = arith.truncf %105 : vector<16x32xf32> to vector<16x32xbf16>
    %c0_25 = arith.constant 0 : index
    %c0_26 = arith.constant 0 : index
    %c0_27 = arith.constant 0 : index
    %107 = vector.load %arg6[%c0_25, %c0_26, %c0_27] : memref<1x32x32xbf16, #tpu.memory_space<vmem>>, vector<1x32x32xbf16>
    %108 = vector.shape_cast %107 : vector<1x32x32xbf16> to vector<32x32xbf16>
    %cst_28 = arith.constant dense<0.000000e+00> : vector<16x32xf32>
    %109 = tpu.matmul %106, %108, %cst_28 {dimension_numbers = #tpu.dot_dimension_numbers<[1], [0], [0], [1], [0, 0, 1, 1], [], []>} : vector<16x32xbf16>, vector<32x32xbf16>, vector<16x32xf32> -> vector<16x32xf32>
    %c0_29 = arith.constant 0 : index
    %c0_30 = arith.constant 0 : index
    %c0_31 = arith.constant 0 : index
    %110 = vector.load %arg7[%c0_29, %c0_30, %c0_31] : memref<1x1x32xf32, #tpu.memory_space<vmem>>, vector<1x1x32xf32>
    %111 = vector.shape_cast %110 : vector<1x1x32xf32> to vector<1x32xf32>
    %112 = vector.broadcast %111 : vector<1x32xf32> to vector<16x32xf32>
    %113 = arith.addf %109, %112 : vector<16x32xf32>
    %114 = vector.shape_cast %113 : vector<16x32xf32> to vector<2x8x32xf32>
    %115 = arith.addf %114, %3 : vector<2x8x32xf32>
    %cst_32 = arith.constant dense<0.000000e+00> : vector<2x8xf32>
    %116 = vector.multi_reduction <add>, %115, %cst_32 [2] : vector<2x8x32xf32> to vector<2x8xf32>
    %117 = vector.shape_cast %116 : vector<2x8xf32> to vector<2x8x1xf32>
    %cst_33 = arith.constant 3.200000e+01 : f32
    %118 = vector.broadcast %cst_33 : f32 to vector<2x8x1xf32>
    %119 = arith.divf %117, %118 : vector<2x8x1xf32>
    %120 = vector.broadcast %119 : vector<2x8x1xf32> to vector<2x8x32xf32>
    %121 = arith.subf %115, %120 : vector<2x8x32xf32>
    %122 = arith.mulf %121, %121 : vector<2x8x32xf32>
    %cst_34 = arith.constant dense<0.000000e+00> : vector<2x8xf32>
    %123 = vector.multi_reduction <add>, %122, %cst_34 [2] : vector<2x8x32xf32> to vector<2x8xf32>
    %124 = vector.shape_cast %123 : vector<2x8xf32> to vector<2x8x1xf32>
    %cst_35 = arith.constant 3.200000e+01 : f32
    %125 = vector.broadcast %cst_35 : f32 to vector<2x8x1xf32>
    %126 = arith.divf %124, %125 : vector<2x8x1xf32>
    %127 = vector.broadcast %119 : vector<2x8x1xf32> to vector<2x8x32xf32>
    %128 = arith.subf %115, %127 : vector<2x8x32xf32>
    %cst_36 = arith.constant 9.99999996E-13 : f32
    %129 = vector.broadcast %cst_36 : f32 to vector<2x8x1xf32>
    %130 = arith.addf %126, %129 : vector<2x8x1xf32>
    %131 = math.rsqrt %130 : vector<2x8x1xf32>
    %132 = vector.broadcast %131 : vector<2x8x1xf32> to vector<2x8x32xf32>
    %133 = arith.mulf %128, %132 : vector<2x8x32xf32>
    %c0_37 = arith.constant 0 : index
    %c0_38 = arith.constant 0 : index
    %c0_39 = arith.constant 0 : index
    %134 = vector.load %arg8[%c0_37, %c0_38, %c0_39] : memref<1x1x32xf32, #tpu.memory_space<vmem>>, vector<1x1x32xf32>
    %135 = vector.shape_cast %134 : vector<1x1x32xf32> to vector<1x32xf32>
    %136 = vector.shape_cast %135 : vector<1x32xf32> to vector<1x1x32xf32>
    %137 = vector.broadcast %136 : vector<1x1x32xf32> to vector<2x8x32xf32>
    %138 = arith.mulf %137, %133 : vector<2x8x32xf32>
    %c0_40 = arith.constant 0 : index
    %c0_41 = arith.constant 0 : index
    %c0_42 = arith.constant 0 : index
    %139 = vector.load %arg9[%c0_40, %c0_41, %c0_42] : memref<1x1x32xf32, #tpu.memory_space<vmem>>, vector<1x1x32xf32>
    %140 = vector.shape_cast %139 : vector<1x1x32xf32> to vector<1x32xf32>
    %141 = vector.shape_cast %140 : vector<1x32xf32> to vector<1x1x32xf32>
    %142 = vector.broadcast %141 : vector<1x1x32xf32> to vector<2x8x32xf32>
    %143 = arith.addf %138, %142 : vector<2x8x32xf32>
    %c0_43 = arith.constant 0 : index
    %c0_44 = arith.constant 0 : index
    %c0_45 = arith.constant 0 : index
    %144 = vector.load %arg10[%c0_43, %c0_44, %c0_45] : memref<2x8x32xf32, #tpu.memory_space<vmem>>, vector<2x8x32xf32>
    tpu.vector_store %arg10[%c0_43, %c0_44, %c0_45], %143 {strides = array<i32>} : memref<2x8x32xf32, #tpu.memory_space<vmem>>, vector<2x8x32xf32>,
    return
  }
  func.func @transform_0(%arg0: i32, %arg1: i32) -> (i32, i32, i32) {
    %c0_i32 = arith.constant 0 : i32
    %c0_i32_0 = arith.constant 0 : i32
    %c0_i32_1 = arith.constant 0 : i32
    return %arg0, %c0_i32, %c0_i32_0 : i32, i32, i32
  }
  func.func @transform_1(%arg0: i32, %arg1: i32) -> (i32, i32) {
    %c0_i32 = arith.constant 0 : i32
    %c0_i32_0 = arith.constant 0 : i32
    %c0_i32_1 = arith.constant 0 : i32
    return %c0_i32, %c0_i32_0 : i32, i32
  }
  func.func @transform_2(%arg0: i32, %arg1: i32) -> (i32, i32, i32) {
    %c0_i32 = arith.constant 0 : i32
    %c0_i32_0 = arith.constant 0 : i32
    %c0_i32_1 = arith.constant 0 : i32
    return %arg1, %c0_i32, %c0_i32_0 : i32, i32, i32
  }
  func.func @transform_3(%arg0: i32, %arg1: i32) -> (i32, i32, i32) {
    %c0_i32 = arith.constant 0 : i32
    %c0_i32_0 = arith.constant 0 : i32
    %c0_i32_1 = arith.constant 0 : i32
    return %arg1, %c0_i32, %c0_i32_0 : i32, i32, i32
  }
  func.func @transform_4(%arg0: i32, %arg1: i32) -> (i32, i32, i32) {
    %c0_i32 = arith.constant 0 : i32
    %c0_i32_0 = arith.constant 0 : i32
    %c0_i32_1 = arith.constant 0 : i32
    return %arg1, %c0_i32, %c0_i32_0 : i32, i32, i32
  }
  func.func @transform_5(%arg0: i32, %arg1: i32) -> (i32, i32, i32) {
    %c0_i32 = arith.constant 0 : i32
    %c0_i32_0 = arith.constant 0 : i32
    %c0_i32_1 = arith.constant 0 : i32
    return %arg1, %c0_i32, %c0_i32_0 : i32, i32, i32
  }
  func.func @transform_6(%arg0: i32, %arg1: i32) -> (i32, i32, i32) {
    %c0_i32 = arith.constant 0 : i32
    %c0_i32_0 = arith.constant 0 : i32
    %c0_i32_1 = arith.constant 0 : i32
    return %arg1, %c0_i32, %c0_i32_0 : i32, i32, i32
  }
  func.func @transform_7(%arg0: i32, %arg1: i32) -> (i32, i32, i32) {
    %c0_i32 = arith.constant 0 : i32
    %c0_i32_0 = arith.constant 0 : i32
    %c0_i32_1 = arith.constant 0 : i32
    return %arg1, %c0_i32, %c0_i32_0 : i32, i32, i32
  }
  func.func @transform_8(%arg0: i32, %arg1: i32) -> (i32, i32, i32) {
    %c0_i32 = arith.constant 0 : i32
    %c0_i32_0 = arith.constant 0 : i32
    %c0_i32_1 = arith.constant 0 : i32
    return %arg0, %c0_i32, %c0_i32_0 : i32, i32, i32
  }
}

</mosaic_0001>

<llo_original>
// kernel: tpu_custom_call.1
$region0: #{tpu_custom_call.1}
  #allocation0 [shape = 'u32[]', space=smem, size = 0x4, offset = 0x4, fixed_abs, tag = 'smem constant byte address 0x4 - core index']
  #allocation1 [shape = 'u32[144,128]{1,0:T(1,128)}', space=vmem, size = 0x12000, scoped, tag = 'internal scratch']
  %s0 = inlined_call_operand.hbm [shape: f32[2,8,32], index: 0, kind: input, shape index: {}]
  %s1 = inlined_call_operand.hbm [shape: f32[8,32], index: 1, kind: input, shape index: {}]
  %s2 = inlined_call_operand.hbm [shape: bf16[2,32,96], index: 2, kind: input, shape index: {}]
  %s3 = inlined_call_operand.vmem [shape: f32[2,1,96], index: 3, kind: input, shape index: {}]
  %s4 = inlined_call_operand.hbm [shape: bf16[2,32,32], index: 4, kind: input, shape index: {}]
  %s5 = inlined_call_operand.vmem [shape: f32[2,1,32], index: 5, kind: input, shape index: {}]
  %s6 = inlined_call_operand.vmem [shape: f32[2,1,32], index: 6, kind: input, shape index: {}]
  %s7 = inlined_call_operand.vmem [shape: f32[2,1,32], index: 7, kind: input, shape index: {}]
  %s8 = inlined_call_operand.hbm [shape: f32[2,8,32], index: 8, kind: output, shape index: {}]
  %s9 = sld [smem:[#allocation0]]
  $region85: #{tpu_custom_call.1} parent=0
    _
  %s11 = ssub.s32 1, %s9
  %s12 = scalar_select 0, %s11, %s9
  $region1: #{tpu_custom_call.1} parent=0
    #allocation2 [shape = 'u8[8192]{0}', space=vmem, size = 0x2000, scoped, tag = 'input window, operand 0, single buffered']
    #allocation3 [shape = 's32[2]{0}', space=sflag, size = 0x8, scoped, tag = 'scoped memory for tpu_custom_call.1']
    #allocation4 [shape = 's32[2]{0}', space=sflag, size = 0x8, scoped, tag = 'scoped memory for tpu_custom_call.1']
    #allocation5 [shape = 'u8[4096]{0}', space=vmem, size = 0x1000, scoped, tag = 'input window, operand 1, single buffered']
    #allocation6 [shape = 's32[1]{0}', space=sflag, size = 0x4, scoped, tag = 'scoped memory for tpu_custom_call.1']
    #allocation7 [shape = 'u8[16384]{0}', space=vmem, size = 0x4000, scoped, tag = 'input window, operand 2']
    #allocation8 [shape = 'u8[16384]{0}', space=vmem, size = 0x4000, scoped, tag = 'input window, operand 4']
    #allocation9 [shape = 'u8[8192]{0}', space=vmem, size = 0x2000, scoped, tag = 'output window, operand 0, single buffered']
    %13 = vsyncpa [#allocation3], 0
    %14 = vsyncpa [#allocation6], 0
    %15 = vsyncpa [#allocation4], 0
    loop: start=0, step=1, limit=4
    $region2: #{tpu_custom_call.1} parent=1 // loop_pre_header
      _
    $region3: #{tpu_custom_call.1} parent=1 // loop_header
      %s17 = sphi 0, %s21
      %p18 = scmp.ge.s32.totalorder %s17, 4
      %s24 = sphi 0, %s36
      %s25 = sphi 0, %s32
      %s26 = sphi 0, %s24
      %s27 = sphi 0, %s25
      %s28 = sphi 0, %s26
      %s29 = sphi 0, %s27
      %s39 = sphi 0, %s41
      %s42 = sphi 0, %s39
      %s43 = sphi 0, %s42
      %s59 = sphi 0, %s43
      %s63 = sphi 0, %s63
      %s65 = sphi 0, %s63
      %s66 = sphi 0, %s65
      %s80 = sphi 0, %s66
      %s86 = sphi 0, %s88
      %s89 = sphi 0, %s86
      %s90 = sphi 0, %s89
      %s106 = sphi 0, %s90
      %s112 = sphi 0, %s114
      %s115 = sphi 0, %s112
      %s116 = sphi 0, %s115
      %s132 = sphi 0, %s116
      %s138 = sphi 0, %s140
      %s141 = sphi 0, %s138
      %s142 = sphi 0, %s141
      %s158 = sphi 0, %s142
      %s164 = sphi 0, %s166
      %s167 = sphi 0, %s164
      %s168 = sphi 0, %s167
      %s184 = sphi 0, %s168
      %s190 = sphi 0, %s192
      %s193 = sphi 0, %s190
      %s194 = sphi 0, %s193
      %s210 = sphi 0, %s194
      %s216 = sphi 0, %s218
      %s219 = sphi 0, %s216
      %s220 = sphi 0, %s219
      %s236 = sphi 0, %s220
      %s242 = sphi 0, %s244
      %s245 = sphi 0, %s242
      %s246 = sphi 0, %s245
      %s262 = sphi 0, %s246
    $region4: #{tpu_custom_call.1} parent=1 // loop_header_branch
      %20 = sbr.rel (%p18) target = $region8
    $region5: #{tpu_custom_call.1} parent=1 // loop_body
      %s22 = ssub.s32 %s17, 1
      %s23 = ssub.s32 %s17, 2
      %s30 = sadd.s32 1, %s25
      %p31 = scmp.ge.s32.totalorder %s30, 2
      %s32 = scalar_select %p31, 0, %s30
      %s33 = sadd.s32 1, %s24
      %s34 = scalar_select %p31, %s33, %s24
      %p35 = scmp.ge.s32.totalorder %s34, 1
      %s36 = scalar_select %p35, 0, %s34
      %s37 = ssub.s32 %s24, %s36
      %p38 = scmp.eq.s32.totalorder %s37, 0
      %s40 = sadd.s32 %s39, 1
      %s41 = scalar_select %p38, %s39, %s40
      %p44 = pneg %p38
      %p45 = scmp.eq.s32.totalorder %s17, 1
      %p46 = por %p44, %p45
      %p47 = scmp.ne.s32.totalorder %s39, %s42
      %p48 = scmp.eq.s32.totalorder %s17, 0
      %p49 = por %p47, %p48
      %p50 = scmp.ne.s32.totalorder %s39, %s42
      %p51 = scmp.eq.s32.totalorder %s22, 1
      %p52 = por %p50, %p51
      %p53 = scmp.ne.s32.totalorder %s42, %s43
      %p54 = scmp.eq.s32.totalorder %s22, 0
      %p55 = por %p53, %p54
      %p56 = scmp.ne.s32.totalorder %s42, %s43
      %p57 = scmp.eq.s32.totalorder %s23, 1
      %p58 = por %p56, %p57
      %p60 = scmp.ne.s32.totalorder %s43, %s59
      %p61 = scmp.eq.s32.totalorder %s23, 0
      %p62 = por %p60, %p61
      %s64 = sadd.s32 %s63, 1
      %p67 = scmp.eq.s32.totalorder %s17, 1
      %p68 = scmp.ne.s32.totalorder %s63, %s65
      %p69 = scmp.eq.s32.totalorder %s17, 0
      %p70 = por %p68, %p69
      %p71 = scmp.ne.s32.totalorder %s63, %s65
      %p72 = scmp.eq.s32.totalorder %s22, 1
      %p73 = por %p71, %p72
      %p74 = scmp.ne.s32.totalorder %s65, %s66
      %p75 = scmp.eq.s32.totalorder %s22, 0
      %p76 = por %p74, %p75
      %p77 = scmp.ne.s32.totalorder %s65, %s66
      %p78 = scmp.eq.s32.totalorder %s23, 1
      %p79 = por %p77, %p78
      %p81 = scmp.ne.s32.totalorder %s66, %s80
      %p82 = scmp.eq.s32.totalorder %s23, 0
      %p83 = por %p81, %p82
      %s84 = ssub.s32 %s25, %s32
      %p85 = scmp.eq.s32.totalorder %s84, 0
      %s87 = sadd.s32 %s86, 1
      %s88 = scalar_select %p85, %s86, %s87
      %p91 = pneg %p85
      %p92 = scmp.eq.s32.totalorder %s17, 1
      %p93 = por %p91, %p92
      %p94 = scmp.ne.s32.totalorder %s86, %s89
      %p95 = scmp.eq.s32.totalorder %s17, 0
      %p96 = por %p94, %p95
      %p97 = scmp.ne.s32.totalorder %s86, %s89
      %p98 = scmp.eq.s32.totalorder %s22, 1
      %p99 = por %p97, %p98
      %p100 = scmp.ne.s32.totalorder %s89, %s90
      %p101 = scmp.eq.s32.totalorder %s22, 0
      %p102 = por %p100, %p101
      %p103 = scmp.ne.s32.totalorder %s89, %s90
      %p104 = scmp.eq.s32.totalorder %s23, 1
      %p105 = por %p103, %p104
      %p107 = scmp.ne.s32.totalorder %s90, %s106
      %p108 = scmp.eq.s32.totalorder %s23, 0
      %p109 = por %p107, %p108
      %s110 = ssub.s32 %s25, %s32
      %p111 = scmp.eq.s32.totalorder %s110, 0
      %s113 = sadd.s32 %s112, 1
      %s114 = scalar_select %p111, %s112, %s113
      %p117 = pneg %p111
      %p118 = scmp.eq.s32.totalorder %s17, 1
      %p119 = por %p117, %p118
      %p120 = scmp.ne.s32.totalorder %s112, %s115
      %p121 = scmp.eq.s32.totalorder %s17, 0
      %p122 = por %p120, %p121
      %p123 = scmp.ne.s32.totalorder %s112, %s115
      %p124 = scmp.eq.s32.totalorder %s22, 1
      %p125 = por %p123, %p124
      %p126 = scmp.ne.s32.totalorder %s115, %s116
      %p127 = scmp.eq.s32.totalorder %s22, 0
      %p128 = por %p126, %p127
      %p129 = scmp.ne.s32.totalorder %s115, %s116
      %p130 = scmp.eq.s32.totalorder %s23, 1
      %p131 = por %p129, %p130
      %p133 = scmp.ne.s32.totalorder %s116, %s132
      %p134 = scmp.eq.s32.totalorder %s23, 0
      %p135 = por %p133, %p134
      %s136 = ssub.s32 %s25, %s32
      %p137 = scmp.eq.s32.totalorder %s136, 0
      %s139 = sadd.s32 %s138, 1
      %s140 = scalar_select %p137, %s138, %s139
      %p143 = pneg %p137
      %p144 = scmp.eq.s32.totalorder %s17, 1
      %p145 = por %p143, %p144
      %p146 = scmp.ne.s32.totalorder %s138, %s141
      %p147 = scmp.eq.s32.totalorder %s17, 0
      %p148 = por %p146, %p147
      %p149 = scmp.ne.s32.totalorder %s138, %s141
      %p150 = scmp.eq.s32.totalorder %s22, 1
      %p151 = por %p149, %p150
      %p152 = scmp.ne.s32.totalorder %s141, %s142
      %p153 = scmp.eq.s32.totalorder %s22, 0
      %p154 = por %p152, %p153
      %p155 = scmp.ne.s32.totalorder %s141, %s142
      %p156 = scmp.eq.s32.totalorder %s23, 1
      %p157 = por %p155, %p156
      %p159 = scmp.ne.s32.totalorder %s142, %s158
      %p160 = scmp.eq.s32.totalorder %s23, 0
      %p161 = por %p159, %p160
      %s162 = ssub.s32 %s25, %s32
      %p163 = scmp.eq.s32.totalorder %s162, 0
      %s165 = sadd.s32 %s164, 1
      %s166 = scalar_select %p163, %s164, %s165
      %p169 = pneg %p163
      %p170 = scmp.eq.s32.totalorder %s17, 1
      %p171 = por %p169, %p170
      %p172 = scmp.ne.s32.totalorder %s164, %s167
      %p173 = scmp.eq.s32.totalorder %s17, 0
      %p174 = por %p172, %p173
      %p175 = scmp.ne.s32.totalorder %s164, %s167
      %p176 = scmp.eq.s32.totalorder %s22, 1
      %p177 = por %p175, %p176
      %p178 = scmp.ne.s32.totalorder %s167, %s168
      %p179 = scmp.eq.s32.totalorder %s22, 0
      %p180 = por %p178, %p179
      %p181 = scmp.ne.s32.totalorder %s167, %s168
      %p182 = scmp.eq.s32.totalorder %s23, 1
      %p183 = por %p181, %p182
      %p185 = scmp.ne.s32.totalorder %s168, %s184
      %p186 = scmp.eq.s32.totalorder %s23, 0
      %p187 = por %p185, %p186
      %s188 = ssub.s32 %s25, %s32
      %p189 = scmp.eq.s32.totalorder %s188, 0
      %s191 = sadd.s32 %s190, 1
      %s192 = scalar_select %p189, %s190, %s191
      %p195 = pneg %p189
      %p196 = scmp.eq.s32.totalorder %s17, 1
      %p197 = por %p195, %p196
      %p198 = scmp.ne.s32.totalorder %s190, %s193
      %p199 = scmp.eq.s32.totalorder %s17, 0
      %p200 = por %p198, %p199
      %p201 = scmp.ne.s32.totalorder %s190, %s193
      %p202 = scmp.eq.s32.totalorder %s22, 1
      %p203 = por %p201, %p202
      %p204 = scmp.ne.s32.totalorder %s193, %s194
      %p205 = scmp.eq.s32.totalorder %s22, 0
      %p206 = por %p204, %p205
      %p207 = scmp.ne.s32.totalorder %s193, %s194
      %p208 = scmp.eq.s32.totalorder %s23, 1
      %p209 = por %p207, %p208
      %p211 = scmp.ne.s32.totalorder %s194, %s210
      %p212 = scmp.eq.s32.totalorder %s23, 0
      %p213 = por %p211, %p212
      %s214 = ssub.s32 %s25, %s32
      %p215 = scmp.eq.s32.totalorder %s214, 0
      %s217 = sadd.s32 %s216, 1
      %s218 = scalar_select %p215, %s216, %s217
      %p221 = pneg %p215
      %p222 = scmp.eq.s32.totalorder %s17, 1
      %p223 = por %p221, %p222
      %p224 = scmp.ne.s32.totalorder %s216, %s219
      %p225 = scmp.eq.s32.totalorder %s17, 0
      %p226 = por %p224, %p225
      %p227 = scmp.ne.s32.totalorder %s216, %s219
      %p228 = scmp.eq.s32.totalorder %s22, 1
      %p229 = por %p227, %p228
      %p230 = scmp.ne.s32.totalorder %s219, %s220
      %p231 = scmp.eq.s32.totalorder %s22, 0
      %p232 = por %p230, %p231
      %p233 = scmp.ne.s32.totalorder %s219, %s220
      %p234 = scmp.eq.s32.totalorder %s23, 1
      %p235 = por %p233, %p234
      %p237 = scmp.ne.s32.totalorder %s220, %s236
      %p238 = scmp.eq.s32.totalorder %s23, 0
      %p239 = por %p237, %p238
      %s240 = ssub.s32 %s24, %s36
      %p241 = scmp.eq.s32.totalorder %s240, 0
      %s243 = sadd.s32 %s242, 1
      %s244 = scalar_select %p241, %s242, %s243
      %p247 = pneg %p241
      %p248 = scmp.eq.s32.totalorder %s17, 1
      %p249 = por %p247, %p248
      %p250 = scmp.ne.s32.totalorder %s242, %s245
      %p251 = scmp.eq.s32.totalorder %s17, 0
      %p252 = por %p250, %p251
      %p253 = scmp.ne.s32.totalorder %s242, %s245
      %p254 = scmp.eq.s32.totalorder %s22, 1
      %p255 = por %p253, %p254
      %p256 = scmp.ne.s32.totalorder %s245, %s246
      %p257 = scmp.eq.s32.totalorder %s22, 0
      %p258 = por %p256, %p257
      %p259 = scmp.ne.s32.totalorder %s245, %s246
      %p260 = scmp.eq.s32.totalorder %s23, 1
      %p261 = por %p259, %p260
      %p263 = scmp.ne.s32.totalorder %s246, %s262
      %p264 = scmp.eq.s32.totalorder %s23, 0
      %p265 = por %p263, %p264
      %p266 = scmp.le.s32.totalorder 1, %s17
      %p267 = scmp.lt.s32.totalorder %s17, 3
      %p268 = pnand %p266, %p267
      %p269 = pneg %p268
      // Predicated region
      $region9: #{tpu_custom_call.1} parent=5 // pred_check
        _
      $region10: #{tpu_custom_call.1} parent=5 // pred_check_branch
        %271 = sbr.rel (%p268) target = $region12
      $region11: #{tpu_custom_call.1} parent=5 // pred_region
        %s272 = ssub.s32 %s17, 1
        // Predicated region
        $region13: #{tpu_custom_call.1} parent=11 // pred_check
          %p273 = pneg %p55
        $region14: #{tpu_custom_call.1} parent=11 // pred_check_branch
          %275 = sbr.rel (%p273) target = $region16
        $region15: #{tpu_custom_call.1} parent=11 // pred_region
          %s276 = smul.u32 2, %s26
          %s278 = ssub.s32 256, 256
          %279 = vsyncadd [#allocation3], %s278
          %s280 = smul.addr %s276, 128
          %s281 = scalar_lea.hbm %s0, %s280
          %s282 = sshll.u32 [#allocation2], 4
          %s283 = int_to_ptr.vmem [resolvable:$true] %s282
          %288 = dma.hbm_to_vmem [thread:$0]  %s281, 256, %s283, [#allocation3], 128, 128, 8
        $region16: #{tpu_custom_call.1} parent=11 // pred_fallthru
          _
        // Predicated region
        $region17: #{tpu_custom_call.1} parent=11 // pred_check
          %p289 = pneg %p76
        $region18: #{tpu_custom_call.1} parent=11 // pred_check_branch
          %291 = sbr.rel (%p289) target = $region20
        $region19: #{tpu_custom_call.1} parent=11 // pred_region
          %s293 = ssub.s32 128, 128
          %294 = vsyncadd [#allocation6], %s293
          %s296 = sshll.u32 [#allocation5], 4
          %s297 = int_to_ptr.vmem [resolvable:$true] %s296
          %299 = dma.hbm_to_vmem [thread:$0]  %s1, 128, %s297, [#allocation6]
        $region20: #{tpu_custom_call.1} parent=11 // pred_fallthru
          _
      $region12: #{tpu_custom_call.1} parent=5 // pred_fallthru
        _
      %p300 = scmp.lt.s32.totalorder %s17, 2
      // Predicated region
      $region21: #{tpu_custom_call.1} parent=5 // pred_check
        %p301 = pneg %p300
      $region22: #{tpu_custom_call.1} parent=5 // pred_check_branch
        %303 = sbr.rel (%p301) target = $region24
      $region23: #{tpu_custom_call.1} parent=5 // pred_region
        // Predicated region
        $region25: #{tpu_custom_call.1} parent=23 // pred_check
          %p304 = pneg %p96
        $region26: #{tpu_custom_call.1} parent=23 // pred_check_branch
          %306 = sbr.rel (%p304) target = $region28
        $region27: #{tpu_custom_call.1} parent=23 // pred_region
          %s307 = sand.u32 %s17, 1
          %s308 = scalar_lea.sflag [#allocation3], %s307
          %s309 = sand.u32 %s86, 1
          %s310 = smul.addr %s309, 16
          %s311 = scalar_lea.vmem [#allocation7], %s310
          %s313 = ssub.s32 256, 256
          %314 = vsyncadd %s308, %s313
          %s315 = smul.addr %s25, 4
          %s316 = smul.addr %s315, 64
          %s317 = scalar_lea.hbm %s2, %s316
          %s318 = sshll.u32 %s311, 4
          %s319 = int_to_ptr.vmem [resolvable:$true] %s318
          %324 = dma.hbm_to_vmem [thread:$0]  %s317, 256, %s319, %s308, 64, 64, 4
        $region28: #{tpu_custom_call.1} parent=23 // pred_fallthru
          _
        // Predicated region
        $region29: #{tpu_custom_call.1} parent=23 // pred_check
          %p325 = pneg %p122
        $region30: #{tpu_custom_call.1} parent=23 // pred_check_branch
          %327 = sbr.rel (%p325) target = $region32
        $region31: #{tpu_custom_call.1} parent=23 // pred_region
          %p328 = scmp.lt.s32.totalorder %s25, 1
          %s329 = scalar_select %p328, %s25, 1
          %s330 = scalar_lea.vmem %s3, %s329
        $region32: #{tpu_custom_call.1} parent=23 // pred_fallthru
          _
        // Predicated region
        $region33: #{tpu_custom_call.1} parent=23 // pred_check
          %p331 = pneg %p148
        $region34: #{tpu_custom_call.1} parent=23 // pred_check_branch
          %333 = sbr.rel (%p331) target = $region36
        $region35: #{tpu_custom_call.1} parent=23 // pred_region
          %s334 = sand.u32 %s17, 1
          %s335 = scalar_lea.sflag [#allocation3], %s334
          %s336 = sand.u32 %s138, 1
          %s337 = smul.addr %s336, 16
          %s338 = scalar_lea.vmem [#allocation8], %s337
          %s340 = ssub.s32 256, 256
          %341 = vsyncadd %s335, %s340
          %s342 = smul.addr %s25, 4
          %s343 = smul.addr %s342, 64
          %s344 = scalar_lea.hbm %s4, %s343
          %s345 = sshll.u32 %s338, 4
          %s346 = int_to_ptr.vmem [resolvable:$true] %s345
          %351 = dma.hbm_to_vmem [thread:$0]  %s344, 256, %s346, %s335, 64, 64, 4
        $region36: #{tpu_custom_call.1} parent=23 // pred_fallthru
          _
        // Predicated region
        $region37: #{tpu_custom_call.1} parent=23 // pred_check
          %p352 = pneg %p174
        $region38: #{tpu_custom_call.1} parent=23 // pred_check_branch
          %354 = sbr.rel (%p352) target = $region40
        $region39: #{tpu_custom_call.1} parent=23 // pred_region
          %p355 = scmp.lt.s32.totalorder %s25, 1
          %s356 = scalar_select %p355, %s25, 1
          %s357 = scalar_lea.vmem %s5, %s356
        $region40: #{tpu_custom_call.1} parent=23 // pred_fallthru
          _
        // Predicated region
        $region41: #{tpu_custom_call.1} parent=23 // pred_check
          %p358 = pneg %p200
        $region42: #{tpu_custom_call.1} parent=23 // pred_check_branch
          %360 = sbr.rel (%p358) target = $region44
        $region43: #{tpu_custom_call.1} parent=23 // pred_region
          %p361 = scmp.lt.s32.totalorder %s25, 1
          %s362 = scalar_select %p361, %s25, 1
          %s363 = scalar_lea.vmem %s6, %s362
        $region44: #{tpu_custom_call.1} parent=23 // pred_fallthru
          _
        // Predicated region
        $region45: #{tpu_custom_call.1} parent=23 // pred_check
          %p364 = pneg %p226
        $region46: #{tpu_custom_call.1} parent=23 // pred_check_branch
          %366 = sbr.rel (%p364) target = $region48
        $region47: #{tpu_custom_call.1} parent=23 // pred_region
          %p367 = scmp.lt.s32.totalorder %s25, 1
          %s368 = scalar_select %p367, %s25, 1
          %s369 = scalar_lea.vmem %s7, %s368
        $region48: #{tpu_custom_call.1} parent=23 // pred_fallthru
          _
      $region24: #{tpu_custom_call.1} parent=5 // pred_fallthru
        _
      %p370 = scmp.le.s32.totalorder 1, %s17
      %p371 = scmp.lt.s32.totalorder %s17, 3
      %p372 = pnand %p370, %p371
      %p373 = pneg %p372
      // Predicated region
      $region49: #{tpu_custom_call.1} parent=5 // pred_check
        _
      $region50: #{tpu_custom_call.1} parent=5 // pred_check_branch
        %375 = sbr.rel (%p372) target = $region52
      $region51: #{tpu_custom_call.1} parent=5 // pred_region
        %s376 = ssub.s32 %s17, 1
        // Predicated region
        $region53: #{tpu_custom_call.1} parent=51 // pred_check
          %p377 = pneg %p55
        $region54: #{tpu_custom_call.1} parent=51 // pred_check_branch
          %379 = sbr.rel (%p377) target = $region56
        $region55: #{tpu_custom_call.1} parent=51 // pred_region
          %380 = dma.done [#allocation3], 256
        $region56: #{tpu_custom_call.1} parent=51 // pred_fallthru
          _
        // Predicated region
        $region57: #{tpu_custom_call.1} parent=51 // pred_check
          %p381 = pneg %p76
        $region58: #{tpu_custom_call.1} parent=51 // pred_check_branch
          %383 = sbr.rel (%p381) target = $region60
        $region59: #{tpu_custom_call.1} parent=51 // pred_region
          %384 = dma.done [#allocation6], 128
        $region60: #{tpu_custom_call.1} parent=51 // pred_fallthru
          _
        %s385 = sand.u32 %s22, 1
        %s386 = scalar_lea.sflag [#allocation3], %s385
        %s387 = sand.u32 %s89, 1
        %s388 = smul.addr %s387, 16
        %s389 = scalar_lea.vmem [#allocation7], %s388
        // Predicated region
        $region61: #{tpu_custom_call.1} parent=51 // pred_check
          %p390 = pneg %p102
        $region62: #{tpu_custom_call.1} parent=51 // pred_check_branch
          %392 = sbr.rel (%p390) target = $region64
        $region63: #{tpu_custom_call.1} parent=51 // pred_region
          %393 = dma.done %s386, 256
        $region64: #{tpu_custom_call.1} parent=51 // pred_fallthru
          _
        %s394 = sand.u32 %s22, 1
        %s395 = scalar_lea.sflag [#allocation3], %s394
        %s396 = sand.u32 %s141, 1
        %s397 = smul.addr %s396, 16
        %s398 = scalar_lea.vmem [#allocation8], %s397
        // Predicated region
        $region65: #{tpu_custom_call.1} parent=51 // pred_check
          %p399 = pneg %p154
        $region66: #{tpu_custom_call.1} parent=51 // pred_check_branch
          %401 = sbr.rel (%p399) target = $region68
        $region67: #{tpu_custom_call.1} parent=51 // pred_region
          %402 = dma.done %s395, 256
        $region68: #{tpu_custom_call.1} parent=51 // pred_fallthru
          _
        %p403 = pneg %p55
        %p404 = pneg %p52
        %p405 = pneg %p76
        %p406 = pneg %p73
        %s407 = sand.u32 %s22, 1
        %s408 = scalar_lea.sflag [#allocation3], %s407
        %s409 = sand.u32 %s89, 1
        %s410 = smul.addr %s409, 16
        %s411 = scalar_lea.vmem [#allocation7], %s410
        %p412 = pneg %p102
        %p413 = pneg %p99
        %p414 = scmp.lt.s32.totalorder %s27, 1
        %s415 = scalar_select %p414, %s27, 1
        %s416 = scalar_lea.vmem %s3, %s415
        %p417 = pneg %p128
        %p418 = pneg %p125
        %s419 = sand.u32 %s22, 1
        %s420 = scalar_lea.sflag [#allocation3], %s419
        %s421 = sand.u32 %s141, 1
        %s422 = smul.addr %s421, 16
        %s423 = scalar_lea.vmem [#allocation8], %s422
        %p424 = pneg %p154
        %p425 = pneg %p151
        %p426 = scmp.lt.s32.totalorder %s27, 1
        %s427 = scalar_select %p426, %s27, 1
        %s428 = scalar_lea.vmem %s5, %s427
        %p429 = pneg %p180
        %p430 = pneg %p177
        %p431 = scmp.lt.s32.totalorder %s27, 1
        %s432 = scalar_select %p431, %s27, 1
        %s433 = scalar_lea.vmem %s6, %s432
        %p434 = pneg %p206
        %p435 = pneg %p203
        %p436 = scmp.lt.s32.totalorder %s27, 1
        %s437 = scalar_select %p436, %s27, 1
        %s438 = scalar_lea.vmem %s7, %s437
        %p439 = pneg %p232
        %p440 = pneg %p229
        %p441 = pneg %p258
        %p442 = pneg %p255
        %s443 = smul.u32 2, %s26
        %p444 = scmp.lt.s32.totalorder %s27, 1
        %s445 = scalar_select %p444, %s27, 1
        %s446 = scalar_lea.vmem %s3, %s445
        %p447 = scmp.lt.s32.totalorder %s27, 1
        %s448 = scalar_select %p447, %s27, 1
        %s449 = scalar_lea.vmem %s5, %s448
        %p450 = scmp.lt.s32.totalorder %s27, 1
        %s451 = scalar_select %p450, %s27, 1
        %s452 = scalar_lea.vmem %s6, %s451
        %p453 = scmp.lt.s32.totalorder %s27, 1
        %s454 = scalar_select %p453, %s27, 1
        %s455 = scalar_lea.vmem %s7, %s454
        %s456 = smul.u32 2, %s26
        %p458 = scmp.eq.s32.totalorder %s27, 0
        // Predicated region
        $region69: #{tpu_custom_call.1} parent=51 // pred_check
          %p459 = pneg %p458
        $region70: #{tpu_custom_call.1} parent=51 // pred_check_branch
          %461 = sbr.rel (%p459) target = $region72
        $region71: #{tpu_custom_call.1} parent=51 // pred_region
          %v462 = vld [vmem:[#allocation2] sm:$0xff]
          %v463 = vld [vmem:[#allocation2 + $0x8] sm:$0xff]
          %v464 = vld [vmem:[#allocation5] sm:$0xff]
          %v465 = vadd.f32 %v462, %v464
          %v466 = vadd.f32 %v463, %v464
          %vm467 = vcmask 261120
          %468 = vst.msk [vmem:[#allocation9] sm:$0xff] %vm467, %v465
          %469 = vst.msk [vmem:[#allocation9 + $0x8] sm:$0xff] %vm467, %v466
        $region72: #{tpu_custom_call.1} parent=51 // pred_fallthru
          _
        %v470 = vld [vmem:[#allocation9] sm:$0xff]
        %v471 = vld [vmem:[#allocation9 + $0x8] sm:$0xff]
        %v472 = vpack.c.bf16 %v471, %v470
        %v473 = vld [vmem:[%s389] sm:$0xf]
        %v474 = vld [vmem:[%s389 + $0x4] sm:$0xf]
        %v475 = vld [vmem:[%s389 + $0x8] sm:$0xf]
        %v476 = vld [vmem:[%s389 + $0xc] sm:$0xf]
        %v477 = vld [vmem:[%s446] sm:$0x1]
        %v479 = vlaneseq
        %v480 = vshrl.u32 %v479, 7
        %v481 = vsub.s32 0, %v480
        %v482 = vrot.slane %v477, %v481
        %v488 = vunpack.c.l.b16 %v473
        %v489 = vunpack.c.l.b16 %v474
        %v490 = vunpack.c.l.b16 %v475
        %v491 = vunpack.c.l.b16 %v476
        %v492 = vpack.c.b16 %v489, %v488
        %v493 = vpack.c.b16 %v491, %v490
        %vm496 = vcmask 261120
        %v498 = vsel %vm496, %v472, 0
        %500 = vmatprep.subr.bf16.mxu0 0
        %501 = vmatpush1.bf16.msra.mxu0 %v492
        %502 = vmatprep.subr.bf16.mxu0 0
        %503 = vmatpush1.bf16.msra.mxu0 %v493
        %504 = vmatprep.subr.bf16.mxu0 0
        %505 = vmatpush1.bf16.msra.mxu0 0
        %506 = vmatprep.subr.bf16.mxu0 0
        %507 = vmatpush1.bf16.msra.mxu0 0
        %508 = vmatprep.subr.bf16.mxu0 0
        %509 = vmatpush1.bf16.msra.mxu0 0
        %510 = vmatprep.subr.bf16.mxu0 0
        %511 = vmatpush1.bf16.msra.mxu0 0
        %512 = vmatprep.subr.bf16.mxu0 0
        %513 = vmatpush1.bf16.msra.mxu0 0
        %514 = vmatprep.subr.bf16.mxu0 0
        %515 = vmatpush1.bf16.msra.mxu0 0
        %516 = vmatprep.subr.bf16.mxu0 0
        %517 = vmatpush1.bf16.msra.mxu0 0
        %518 = vmatprep.subr.bf16.mxu0 0
        %519 = vmatpush1.bf16.msra.mxu0 0
        %520 = vmatprep.subr.bf16.mxu0 0
        %521 = vmatpush1.bf16.msra.mxu0 0
        %522 = vmatprep.subr.bf16.mxu0 0
        %523 = vmatpush1.bf16.msra.mxu0 0
        %524 = vmatprep.subr.bf16.mxu0 0
        %525 = vmatpush1.bf16.msra.mxu0 0
        %526 = vmatprep.subr.bf16.mxu0 0
        %527 = vmatpush1.bf16.msra.mxu0 0
        %528 = vmatprep.subr.bf16.mxu0 0
        %529 = vmatpush1.bf16.msra.mxu0 0
        %530 = vmatprep.subr.bf16.mxu0 0
        %531 = vmatpush1.bf16.msra.mxu0 0
        %532 = vmatprep.mubr.bf16.mxu0 0
        %533 = vmatmul.mubr.bf16.gmra.mrb[0].mxu0 %v498
        %v534 = vpop.f32.mrb[0].mxu0
        %v535 = vadd.f32 %v482, %v534
        %v536 = vpop.f32.mrb[0].mxu0
        %v537 = vpop.f32.mrb[0].mxu0
        %v538 = vadd.f32 %v482, %v537
        %v539 = vpop.f32.mrb[0].mxu0
        %540 = vdwg.mxu0
        %v541 = vpack.c.bf16 %v535, %v535
        %v542 = vpack.c.bf16 %v538, %v538
        %544 = vrot.lane.b32.xlu0 %v541, 96
        %v545 = vpop.permute.xlu0 %544
        %vm546 = vcmask 64512
        %v548 = vsel %vm546, %v541, 0
        %v551 = vsel %vm546, %v545, 0
        %553 = vmatprep.subr.bf16.mxu0 0
        %554 = vmatpush1.bf16.xpose.msra.mxu0 %v551
        %555 = vmatprep.subr.bf16.mxu0 0
        %556 = vmatpush1.bf16.xpose.msra.mxu0 0
        %557 = vmatprep.subr.bf16.mxu0 0
        %558 = vmatpush1.bf16.xpose.msra.mxu0 0
        %559 = vmatprep.subr.bf16.mxu0 0
        %560 = vmatpush1.bf16.xpose.msra.mxu0 0
        %561 = vmatprep.subr.bf16.mxu0 0
        %562 = vmatpush1.bf16.xpose.msra.mxu0 0
        %563 = vmatprep.subr.bf16.mxu0 0
        %564 = vmatpush1.bf16.xpose.msra.mxu0 0
        %565 = vmatprep.subr.bf16.mxu0 0
        %566 = vmatpush1.bf16.xpose.msra.mxu0 0
        %567 = vmatprep.subr.bf16.mxu0 0
        %568 = vmatpush1.bf16.xpose.msra.mxu0 0
        %569 = vmatprep.subr.bf16.mxu0 0
        %570 = vmatpush1.bf16.xpose.msra.mxu0 0
        %571 = vmatprep.subr.bf16.mxu0 0
        %572 = vmatpush1.bf16.xpose.msra.mxu0 0
        %573 = vmatprep.subr.bf16.mxu0 0
        %574 = vmatpush1.bf16.xpose.msra.mxu0 0
        %575 = vmatprep.subr.bf16.mxu0 0
        %576 = vmatpush1.bf16.xpose.msra.mxu0 0
        %577 = vmatprep.subr.bf16.mxu0 0
        %578 = vmatpush1.bf16.xpose.msra.mxu0 0
        %579 = vmatprep.subr.bf16.mxu0 0
        %580 = vmatpush1.bf16.xpose.msra.mxu0 0
        %581 = vmatprep.subr.bf16.mxu0 0
        %582 = vmatpush1.bf16.xpose.msra.mxu0 0
        %583 = vmatprep.subr.bf16.mxu0 0
        %584 = vmatpush1.bf16.xpose.msra.mxu0 0
        %585 = vmatprep.mubr.bf16.mxu0 0
        %586 = vmatmul.mubr.bf16.gmra.mrb[0].mxu0 %v548
        %v587 = vpop.f32.mrb[0].mxu0
        %v588 = vadd.f32 0.0, %v587
        %v589 = vpop.f32.mrb[0].mxu0
        %v590 = vpop.f32.mrb[0].mxu0
        %v591 = vpop.f32.mrb[0].mxu0
        %592 = vdwg.mxu0
        %594 = vrot.lane.b32.xlu0 %v542, 96
        %v595 = vpop.permute.xlu0 %594
        %v597 = vsel %vm546, %v542, 0
        %v600 = vsel %vm546, %v595, 0
        %602 = vmatprep.subr.bf16.mxu0 0
        %603 = vmatpush1.bf16.xpose.msra.mxu0 %v600
        %604 = vmatprep.subr.bf16.mxu0 0
        %605 = vmatpush1.bf16.xpose.msra.mxu0 0
        %606 = vmatprep.subr.bf16.mxu0 0
        %607 = vmatpush1.bf16.xpose.msra.mxu0 0
        %608 = vmatprep.subr.bf16.mxu0 0
        %609 = vmatpush1.bf16.xpose.msra.mxu0 0
        %610 = vmatprep.subr.bf16.mxu0 0
        %611 = vmatpush1.bf16.xpose.msra.mxu0 0
        %612 = vmatprep.subr.bf16.mxu0 0
        %613 = vmatpush1.bf16.xpose.msra.mxu0 0
        %614 = vmatprep.subr.bf16.mxu0 0
        %615 = vmatpush1.bf16.xpose.msra.mxu0 0
        %616 = vmatprep.subr.bf16.mxu0 0
        %617 = vmatpush1.bf16.xpose.msra.mxu0 0
        %618 = vmatprep.subr.bf16.mxu0 0
        %619 = vmatpush1.bf16.xpose.msra.mxu0 0
        %620 = vmatprep.subr.bf16.mxu0 0
        %621 = vmatpush1.bf16.xpose.msra.mxu0 0
        %622 = vmatprep.subr.bf16.mxu0 0
        %623 = vmatpush1.bf16.xpose.msra.mxu0 0
        %624 = vmatprep.subr.bf16.mxu0 0
        %625 = vmatpush1.bf16.xpose.msra.mxu0 0
        %626 = vmatprep.subr.bf16.mxu0 0
        %627 = vmatpush1.bf16.xpose.msra.mxu0 0
        %628 = vmatprep.subr.bf16.mxu0 0
        %629 = vmatpush1.bf16.xpose.msra.mxu0 0
        %630 = vmatprep.subr.bf16.mxu0 0
        %631 = vmatpush1.bf16.xpose.msra.mxu0 0
        %632 = vmatprep.subr.bf16.mxu0 0
        %633 = vmatpush1.bf16.xpose.msra.mxu0 0
        %634 = vmatprep.mubr.bf16.mxu0 0
        %635 = vmatmul.mubr.bf16.gmra.mrb[0].mxu0 %v597
        %v636 = vpop.f32.mrb[0].mxu0
        %v637 = vadd.f32 0.0, %v636
        %v638 = vpop.f32.mrb[0].mxu0
        %v639 = vpop.f32.mrb[0].mxu0
        %v640 = vpop.f32.mrb[0].mxu0
        %641 = vdwg.mxu0
        %v642 = vsel %vm546, %v588, -inf
        %643 = vmax.xlane.f32.xlu0 %v642
        %v644 = vpop.xlane.xlu0 %643
        %v645 = vsel %vm546, %v637, -inf
        %646 = vmax.xlane.f32.xlu0 %v645
        %v647 = vpop.xlane.xlu0 %646
        %v648 = vsub.f32 %v588, %v644
        %v649 = vsub.f32 %v637, %v647
        %v650 = vmul.f32 %v648, 1.442695
        %v651 = vpow.pop %v650
        %v652 = vmul.f32 %v649, 1.442695
        %v653 = vpow.pop %v652
        %v654 = vsel %vm546, %v651, 0.0
        %655 = vadd.xlane.f32.xlu0 %v654
        %v656 = vpop.xlane.xlu0 %655
        %v657 = vsel %vm546, %v653, 0.0
        %658 = vadd.xlane.f32.xlu0 %v657
        %v659 = vpop.xlane.xlu0 %658
        %v660 = vrcp.pop %v656
        %v661 = vrcp.pop %v659
        %v662 = vmul.f32 %v651, %v660
        %v663 = vmul.f32 %v653, %v661
        %v664 = vpack.c.bf16 %v662, %v662
        %v665 = vpack.c.bf16 %v663, %v663
        %666 = vrot.lane.b32.xlu0 %v541, 64
        %v667 = vpop.permute.xlu0 %666
        %v669 = vsel %vm546, %v664, 0
        %vm671 = vcmask 1043456
        %v673 = vsel %vm671, %v667, 0
        %675 = vmatprep.subr.bf16.mxu0 0
        %676 = vmatpush1.bf16.msra.mxu0 %v673
        %677 = vmatprep.subr.bf16.mxu0 0
        %678 = vmatpush1.bf16.msra.mxu0 0
        %679 = vmatprep.subr.bf16.mxu0 0
        %680 = vmatpush1.bf16.msra.mxu0 0
        %681 = vmatprep.subr.bf16.mxu0 0
        %682 = vmatpush1.bf16.msra.mxu0 0
        %683 = vmatprep.subr.bf16.mxu0 0
        %684 = vmatpush1.bf16.msra.mxu0 0
        %685 = vmatprep.subr.bf16.mxu0 0
        %686 = vmatpush1.bf16.msra.mxu0 0
        %687 = vmatprep.subr.bf16.mxu0 0
        %688 = vmatpush1.bf16.msra.mxu0 0
        %689 = vmatprep.subr.bf16.mxu0 0
        %690 = vmatpush1.bf16.msra.mxu0 0
        %691 = vmatprep.subr.bf16.mxu0 0
        %692 = vmatpush1.bf16.msra.mxu0 0
        %693 = vmatprep.subr.bf16.mxu0 0
        %694 = vmatpush1.bf16.msra.mxu0 0
        %695 = vmatprep.subr.bf16.mxu0 0
        %696 = vmatpush1.bf16.msra.mxu0 0
        %697 = vmatprep.subr.bf16.mxu0 0
        %698 = vmatpush1.bf16.msra.mxu0 0
        %699 = vmatprep.subr.bf16.mxu0 0
        %700 = vmatpush1.bf16.msra.mxu0 0
        %701 = vmatprep.subr.bf16.mxu0 0
        %702 = vmatpush1.bf16.msra.mxu0 0
        %703 = vmatprep.subr.bf16.mxu0 0
        %704 = vmatpush1.bf16.msra.mxu0 0
        %705 = vmatprep.subr.bf16.mxu0 0
        %706 = vmatpush1.bf16.msra.mxu0 0
        %707 = vmatprep.mubr.bf16.mxu0 0
        %708 = vmatmul.mubr.bf16.gmra.mrb[0].mxu0 %v669
        %v709 = vpop.f32.mrb[0].mxu0
        %v710 = vadd.f32 0.0, %v709
        %v711 = vpop.f32.mrb[0].mxu0
        %v712 = vpop.f32.mrb[0].mxu0
        %v713 = vpop.f32.mrb[0].mxu0
        %714 = vdwg.mxu0
        %715 = vrot.lane.b32.xlu0 %v542, 64
        %v716 = vpop.permute.xlu0 %715
        %v718 = vsel %vm546, %v665, 0
        %v721 = vsel %vm671, %v716, 0
        %723 = vmatprep.subr.bf16.mxu0 0
        %724 = vmatpush1.bf16.msra.mxu0 %v721
        %725 = vmatprep.subr.bf16.mxu0 0
        %726 = vmatpush1.bf16.msra.mxu0 0
        %727 = vmatprep.subr.bf16.mxu0 0
        %728 = vmatpush1.bf16.msra.mxu0 0
        %729 = vmatprep.subr.bf16.mxu0 0
        %730 = vmatpush1.bf16.msra.mxu0 0
        %731 = vmatprep.subr.bf16.mxu0 0
        %732 = vmatpush1.bf16.msra.mxu0 0
        %733 = vmatprep.subr.bf16.mxu0 0
        %734 = vmatpush1.bf16.msra.mxu0 0
        %735 = vmatprep.subr.bf16.mxu0 0
        %736 = vmatpush1.bf16.msra.mxu0 0
        %737 = vmatprep.subr.bf16.mxu0 0
        %738 = vmatpush1.bf16.msra.mxu0 0
        %739 = vmatprep.subr.bf16.mxu0 0
        %740 = vmatpush1.bf16.msra.mxu0 0
        %741 = vmatprep.subr.bf16.mxu0 0
        %742 = vmatpush1.bf16.msra.mxu0 0
        %743 = vmatprep.subr.bf16.mxu0 0
        %744 = vmatpush1.bf16.msra.mxu0 0
        %745 = vmatprep.subr.bf16.mxu0 0
        %746 = vmatpush1.bf16.msra.mxu0 0
        %747 = vmatprep.subr.bf16.mxu0 0
        %748 = vmatpush1.bf16.msra.mxu0 0
        %749 = vmatprep.subr.bf16.mxu0 0
        %750 = vmatpush1.bf16.msra.mxu0 0
        %751 = vmatprep.subr.bf16.mxu0 0
        %752 = vmatpush1.bf16.msra.mxu0 0
        %753 = vmatprep.subr.bf16.mxu0 0
        %754 = vmatpush1.bf16.msra.mxu0 0
        %755 = vmatprep.mubr.bf16.mxu0 0
        %756 = vmatmul.mubr.bf16.gmra.mrb[0].mxu0 %v718
        %v757 = vpop.f32.mrb[0].mxu0
        %v758 = vadd.f32 0.0, %v757
        %v759 = vpop.f32.mrb[0].mxu0
        %v760 = vpop.f32.mrb[0].mxu0
        %v761 = vpop.f32.mrb[0].mxu0
        %762 = vdwg.mxu0
        %763 = vrot.lane.b32.xlu0 %v541, 120
        %v764 = vpop.permute.xlu0 %763
        %765 = vrot.lane.b32.xlu0 %v541, 88
        %v766 = vpop.permute.xlu0 %765
        %v768 = vsel %vm546, %v764, 0
        %v771 = vsel %vm546, %v766, 0
        %773 = vmatprep.subr.bf16.mxu0 0
        %774 = vmatpush1.bf16.xpose.msra.mxu0 %v771
        %775 = vmatprep.subr.bf16.mxu0 0
        %776 = vmatpush1.bf16.xpose.msra.mxu0 0
        %777 = vmatprep.subr.bf16.mxu0 0
        %778 = vmatpush1.bf16.xpose.msra.mxu0 0
        %779 = vmatprep.subr.bf16.mxu0 0
        %780 = vmatpush1.bf16.xpose.msra.mxu0 0
        %781 = vmatprep.subr.bf16.mxu0 0
        %782 = vmatpush1.bf16.xpose.msra.mxu0 0
        %783 = vmatprep.subr.bf16.mxu0 0
        %784 = vmatpush1.bf16.xpose.msra.mxu0 0
        %785 = vmatprep.subr.bf16.mxu0 0
        %786 = vmatpush1.bf16.xpose.msra.mxu0 0
        %787 = vmatprep.subr.bf16.mxu0 0
        %788 = vmatpush1.bf16.xpose.msra.mxu0 0
        %789 = vmatprep.subr.bf16.mxu0 0
        %790 = vmatpush1.bf16.xpose.msra.mxu0 0
        %791 = vmatprep.subr.bf16.mxu0 0
        %792 = vmatpush1.bf16.xpose.msra.mxu0 0
        %793 = vmatprep.subr.bf16.mxu0 0
        %794 = vmatpush1.bf16.xpose.msra.mxu0 0
        %795 = vmatprep.subr.bf16.mxu0 0
        %796 = vmatpush1.bf16.xpose.msra.mxu0 0
        %797 = vmatprep.subr.bf16.mxu0 0
        %798 = vmatpush1.bf16.xpose.msra.mxu0 0
        %799 = vmatprep.subr.bf16.mxu0 0
        %800 = vmatpush1.bf16.xpose.msra.mxu0 0
        %801 = vmatprep.subr.bf16.mxu0 0
        %802 = vmatpush1.bf16.xpose.msra.mxu0 0
        %803 = vmatprep.subr.bf16.mxu0 0
        %804 = vmatpush1.bf16.xpose.msra.mxu0 0
        %805 = vmatprep.mubr.bf16.mxu0 0
        %806 = vmatmul.mubr.bf16.gmra.mrb[0].mxu0 %v768
        %v807 = vpop.f32.mrb[0].mxu0
        %v808 = vadd.f32 0.0, %v807
        %v809 = vpop.f32.mrb[0].mxu0
        %v810 = vpop.f32.mrb[0].mxu0
        %v811 = vpop.f32.mrb[0].mxu0
        %812 = vdwg.mxu0
        %813 = vrot.lane.b32.xlu0 %v542, 120
        %v814 = vpop.permute.xlu0 %813
        %815 = vrot.lane.b32.xlu0 %v542, 88
        %v816 = vpop.permute.xlu0 %815
        %v818 = vsel %vm546, %v814, 0
        %v821 = vsel %vm546, %v816, 0
        %823 = vmatprep.subr.bf16.mxu0 0
        %824 = vmatpush1.bf16.xpose.msra.mxu0 %v821
        %825 = vmatprep.subr.bf16.mxu0 0
        %826 = vmatpush1.bf16.xpose.msra.mxu0 0
        %827 = vmatprep.subr.bf16.mxu0 0
        %828 = vmatpush1.bf16.xpose.msra.mxu0 0
        %829 = vmatprep.subr.bf16.mxu0 0
        %830 = vmatpush1.bf16.xpose.msra.mxu0 0
        %831 = vmatprep.subr.bf16.mxu0 0
        %832 = vmatpush1.bf16.xpose.msra.mxu0 0
        %833 = vmatprep.subr.bf16.mxu0 0
        %834 = vmatpush1.bf16.xpose.msra.mxu0 0
        %835 = vmatprep.subr.bf16.mxu0 0
        %836 = vmatpush1.bf16.xpose.msra.mxu0 0
        %837 = vmatprep.subr.bf16.mxu0 0
        %838 = vmatpush1.bf16.xpose.msra.mxu0 0
        %839 = vmatprep.subr.bf16.mxu0 0
        %840 = vmatpush1.bf16.xpose.msra.mxu0 0
        %841 = vmatprep.subr.bf16.mxu0 0
        %842 = vmatpush1.bf16.xpose.msra.mxu0 0
        %843 = vmatprep.subr.bf16.mxu0 0
        %844 = vmatpush1.bf16.xpose.msra.mxu0 0
        %845 = vmatprep.subr.bf16.mxu0 0
        %846 = vmatpush1.bf16.xpose.msra.mxu0 0
        %847 = vmatprep.subr.bf16.mxu0 0
        %848 = vmatpush1.bf16.xpose.msra.mxu0 0
        %849 = vmatprep.subr.bf16.mxu0 0
        %850 = vmatpush1.bf16.xpose.msra.mxu0 0
        %851 = vmatprep.subr.bf16.mxu0 0
        %852 = vmatpush1.bf16.xpose.msra.mxu0 0
        %853 = vmatprep.subr.bf16.mxu0 0
        %854 = vmatpush1.bf16.xpose.msra.mxu0 0
        %855 = vmatprep.mubr.bf16.mxu0 0
        %856 = vmatmul.mubr.bf16.gmra.mrb[0].mxu0 %v818
        %v857 = vpop.f32.mrb[0].mxu0
        %v858 = vadd.f32 0.0, %v857
        %v859 = vpop.f32.mrb[0].mxu0
        %v860 = vpop.f32.mrb[0].mxu0
        %v861 = vpop.f32.mrb[0].mxu0
        %862 = vdwg.mxu0
        %v863 = vsel %vm546, %v808, -inf
        %864 = vmax.xlane.f32.xlu0 %v863
        %v865 = vpop.xlane.xlu0 %864
        %v866 = vsel %vm546, %v858, -inf
        %867 = vmax.xlane.f32.xlu0 %v866
        %v868 = vpop.xlane.xlu0 %867
        %v869 = vsub.f32 %v808, %v865
        %v870 = vsub.f32 %v858, %v868
        %v871 = vmul.f32 %v869, 1.442695
        %v872 = vpow.pop %v871
        %v873 = vmul.f32 %v870, 1.442695
        %v874 = vpow.pop %v873
        %v875 = vsel %vm546, %v872, 0.0
        %876 = vadd.xlane.f32.xlu0 %v875
        %v877 = vpop.xlane.xlu0 %876
        %v878 = vsel %vm546, %v874, 0.0
        %879 = vadd.xlane.f32.xlu0 %v878
        %v880 = vpop.xlane.xlu0 %879
        %v881 = vrcp.pop %v877
        %v882 = vrcp.pop %v880
        %v883 = vmul.f32 %v872, %v881
        %v884 = vmul.f32 %v874, %v882
        %v885 = vpack.c.bf16 %v883, %v883
        %v886 = vpack.c.bf16 %v884, %v884
        %887 = vrot.lane.b32.xlu0 %v541, 56
        %v888 = vpop.permute.xlu0 %887
        %v890 = vsel %vm546, %v885, 0
        %v893 = vsel %vm671, %v888, 0
        %895 = vmatprep.subr.bf16.mxu0 0
        %896 = vmatpush1.bf16.msra.mxu0 %v893
        %897 = vmatprep.subr.bf16.mxu0 0
        %898 = vmatpush1.bf16.msra.mxu0 0
        %899 = vmatprep.subr.bf16.mxu0 0
        %900 = vmatpush1.bf16.msra.mxu0 0
        %901 = vmatprep.subr.bf16.mxu0 0
        %902 = vmatpush1.bf16.msra.mxu0 0
        %903 = vmatprep.subr.bf16.mxu0 0
        %904 = vmatpush1.bf16.msra.mxu0 0
        %905 = vmatprep.subr.bf16.mxu0 0
        %906 = vmatpush1.bf16.msra.mxu0 0
        %907 = vmatprep.subr.bf16.mxu0 0
        %908 = vmatpush1.bf16.msra.mxu0 0
        %909 = vmatprep.subr.bf16.mxu0 0
        %910 = vmatpush1.bf16.msra.mxu0 0
        %911 = vmatprep.subr.bf16.mxu0 0
        %912 = vmatpush1.bf16.msra.mxu0 0
        %913 = vmatprep.subr.bf16.mxu0 0
        %914 = vmatpush1.bf16.msra.mxu0 0
        %915 = vmatprep.subr.bf16.mxu0 0
        %916 = vmatpush1.bf16.msra.mxu0 0
        %917 = vmatprep.subr.bf16.mxu0 0
        %918 = vmatpush1.bf16.msra.mxu0 0
        %919 = vmatprep.subr.bf16.mxu0 0
        %920 = vmatpush1.bf16.msra.mxu0 0
        %921 = vmatprep.subr.bf16.mxu0 0
        %922 = vmatpush1.bf16.msra.mxu0 0
        %923 = vmatprep.subr.bf16.mxu0 0
        %924 = vmatpush1.bf16.msra.mxu0 0
        %925 = vmatprep.subr.bf16.mxu0 0
        %926 = vmatpush1.bf16.msra.mxu0 0
        %927 = vmatprep.mubr.bf16.mxu0 0
        %928 = vmatmul.mubr.bf16.gmra.mrb[0].mxu0 %v890
        %v929 = vpop.f32.mrb[0].mxu0
        %v930 = vadd.f32 0.0, %v929
        %v931 = vpop.f32.mrb[0].mxu0
        %v932 = vpop.f32.mrb[0].mxu0
        %v933 = vpop.f32.mrb[0].mxu0
        %934 = vdwg.mxu0
        %935 = vrot.lane.b32.xlu0 %v542, 56
        %v936 = vpop.permute.xlu0 %935
        %v938 = vsel %vm546, %v886, 0
        %v941 = vsel %vm671, %v936, 0
        %943 = vmatprep.subr.bf16.mxu0 0
        %944 = vmatpush1.bf16.msra.mxu0 %v941
        %945 = vmatprep.subr.bf16.mxu0 0
        %946 = vmatpush1.bf16.msra.mxu0 0
        %947 = vmatprep.subr.bf16.mxu0 0
        %948 = vmatpush1.bf16.msra.mxu0 0
        %949 = vmatprep.subr.bf16.mxu0 0
        %950 = vmatpush1.bf16.msra.mxu0 0
        %951 = vmatprep.subr.bf16.mxu0 0
        %952 = vmatpush1.bf16.msra.mxu0 0
        %953 = vmatprep.subr.bf16.mxu0 0
        %954 = vmatpush1.bf16.msra.mxu0 0
        %955 = vmatprep.subr.bf16.mxu0 0
        %956 = vmatpush1.bf16.msra.mxu0 0
        %957 = vmatprep.subr.bf16.mxu0 0
        %958 = vmatpush1.bf16.msra.mxu0 0
        %959 = vmatprep.subr.bf16.mxu0 0
        %960 = vmatpush1.bf16.msra.mxu0 0
        %961 = vmatprep.subr.bf16.mxu0 0
        %962 = vmatpush1.bf16.msra.mxu0 0
        %963 = vmatprep.subr.bf16.mxu0 0
        %964 = vmatpush1.bf16.msra.mxu0 0
        %965 = vmatprep.subr.bf16.mxu0 0
        %966 = vmatpush1.bf16.msra.mxu0 0
        %967 = vmatprep.subr.bf16.mxu0 0
        %968 = vmatpush1.bf16.msra.mxu0 0
        %969 = vmatprep.subr.bf16.mxu0 0
        %970 = vmatpush1.bf16.msra.mxu0 0
        %971 = vmatprep.subr.bf16.mxu0 0
        %972 = vmatpush1.bf16.msra.mxu0 0
        %973 = vmatprep.subr.bf16.mxu0 0
        %974 = vmatpush1.bf16.msra.mxu0 0
        %975 = vmatprep.mubr.bf16.mxu0 0
        %976 = vmatmul.mubr.bf16.gmra.mrb[0].mxu0 %v938
        %v977 = vpop.f32.mrb[0].mxu0
        %v978 = vadd.f32 0.0, %v977
        %v979 = vpop.f32.mrb[0].mxu0
        %v980 = vpop.f32.mrb[0].mxu0
        %v981 = vpop.f32.mrb[0].mxu0
        %982 = vdwg.mxu0
        %983 = vrot.lane.b32.xlu0 %v541, 112
        %v984 = vpop.permute.xlu0 %983
        %985 = vrot.lane.b32.xlu0 %v541, 80
        %v986 = vpop.permute.xlu0 %985
        %v988 = vsel %vm546, %v984, 0
        %v991 = vsel %vm546, %v986, 0
        %993 = vmatprep.subr.bf16.mxu0 0
        %994 = vmatpush1.bf16.xpose.msra.mxu0 %v991
        %995 = vmatprep.subr.bf16.mxu0 0
        %996 = vmatpush1.bf16.xpose.msra.mxu0 0
        %997 = vmatprep.subr.bf16.mxu0 0
        %998 = vmatpush1.bf16.xpose.msra.mxu0 0
        %999 = vmatprep.subr.bf16.mxu0 0
        %1000 = vmatpush1.bf16.xpose.msra.mxu0 0
        %1001 = vmatprep.subr.bf16.mxu0 0
        %1002 = vmatpush1.bf16.xpose.msra.mxu0 0
        %1003 = vmatprep.subr.bf16.mxu0 0
        %1004 = vmatpush1.bf16.xpose.msra.mxu0 0
        %1005 = vmatprep.subr.bf16.mxu0 0
        %1006 = vmatpush1.bf16.xpose.msra.mxu0 0
        %1007 = vmatprep.subr.bf16.mxu0 0
        %1008 = vmatpush1.bf16.xpose.msra.mxu0 0
        %1009 = vmatprep.subr.bf16.mxu0 0
        %1010 = vmatpush1.bf16.xpose.msra.mxu0 0
        %1011 = vmatprep.subr.bf16.mxu0 0
        %1012 = vmatpush1.bf16.xpose.msra.mxu0 0
        %1013 = vmatprep.subr.bf16.mxu0 0
        %1014 = vmatpush1.bf16.xpose.msra.mxu0 0
        %1015 = vmatprep.subr.bf16.mxu0 0
        %1016 = vmatpush1.bf16.xpose.msra.mxu0 0
        %1017 = vmatprep.subr.bf16.mxu0 0
        %1018 = vmatpush1.bf16.xpose.msra.mxu0 0
        %1019 = vmatprep.subr.bf16.mxu0 0
        %1020 = vmatpush1.bf16.xpose.msra.mxu0 0
        %1021 = vmatprep.subr.bf16.mxu0 0
        %1022 = vmatpush1.bf16.xpose.msra.mxu0 0
        %1023 = vmatprep.subr.bf16.mxu0 0
        %1024 = vmatpush1.bf16.xpose.msra.mxu0 0
        %1025 = vmatprep.mubr.bf16.mxu0 0
        %1026 = vmatmul.mubr.bf16.gmra.mrb[0].mxu0 %v988
        %v1027 = vpop.f32.mrb[0].mxu0
        %v1028 = vadd.f32 0.0, %v1027
        %v1029 = vpop.f32.mrb[0].mxu0
        %v1030 = vpop.f32.mrb[0].mxu0
        %v1031 = vpop.f32.mrb[0].mxu0
        %1032 = vdwg.mxu0
        %1033 = vrot.lane.b32.xlu0 %v542, 112
        %v1034 = vpop.permute.xlu0 %1033
        %1035 = vrot.lane.b32.xlu0 %v542, 80
        %v1036 = vpop.permute.xlu0 %1035
        %v1038 = vsel %vm546, %v1034, 0
        %v1041 = vsel %vm546, %v1036, 0
        %1043 = vmatprep.subr.bf16.mxu0 0
        %1044 = vmatpush1.bf16.xpose.msra.mxu0 %v1041
        %1045 = vmatprep.subr.bf16.mxu0 0
        %1046 = vmatpush1.bf16.xpose.msra.mxu0 0
        %1047 = vmatprep.subr.bf16.mxu0 0
        %1048 = vmatpush1.bf16.xpose.msra.mxu0 0
        %1049 = vmatprep.subr.bf16.mxu0 0
        %1050 = vmatpush1.bf16.xpose.msra.mxu0 0
        %1051 = vmatprep.subr.bf16.mxu0 0
        %1052 = vmatpush1.bf16.xpose.msra.mxu0 0
        %1053 = vmatprep.subr.bf16.mxu0 0
        %1054 = vmatpush1.bf16.xpose.msra.mxu0 0
        %1055 = vmatprep.subr.bf16.mxu0 0
        %1056 = vmatpush1.bf16.xpose.msra.mxu0 0
        %1057 = vmatprep.subr.bf16.mxu0 0
        %1058 = vmatpush1.bf16.xpose.msra.mxu0 0
        %1059 = vmatprep.subr.bf16.mxu0 0
        %1060 = vmatpush1.bf16.xpose.msra.mxu0 0
        %1061 = vmatprep.subr.bf16.mxu0 0
        %1062 = vmatpush1.bf16.xpose.msra.mxu0 0
        %1063 = vmatprep.subr.bf16.mxu0 0
        %1064 = vmatpush1.bf16.xpose.msra.mxu0 0
        %1065 = vmatprep.subr.bf16.mxu0 0
        %1066 = vmatpush1.bf16.xpose.msra.mxu0 0
        %1067 = vmatprep.subr.bf16.mxu0 0
        %1068 = vmatpush1.bf16.xpose.msra.mxu0 0
        %1069 = vmatprep.subr.bf16.mxu0 0
        %1070 = vmatpush1.bf16.xpose.msra.mxu0 0
        %1071 = vmatprep.subr.bf16.mxu0 0
        %1072 = vmatpush1.bf16.xpose.msra.mxu0 0
        %1073 = vmatprep.subr.bf16.mxu0 0
        %1074 = vmatpush1.bf16.xpose.msra.mxu0 0
        %1075 = vmatprep.mubr.bf16.mxu0 0
        %1076 = vmatmul.mubr.bf16.gmra.mrb[0].mxu0 %v1038
        %v1077 = vpop.f32.mrb[0].mxu0
        %v1078 = vadd.f32 0.0, %v1077
        %v1079 = vpop.f32.mrb[0].mxu0
        %v1080 = vpop.f32.mrb[0].mxu0
        %v1081 = vpop.f32.mrb[0].mxu0
        %1082 = vdwg.mxu0
        %v1083 = vsel %vm546, %v1028, -inf
        %1084 = vmax.xlane.f32.xlu0 %v1083
        %v1085 = vpop.xlane.xlu0 %1084
        %v1086 = vsel %vm546, %v1078, -inf
        %1087 = vmax.xlane.f32.xlu0 %v1086
        %v1088 = vpop.xlane.xlu0 %1087
        %v1089 = vsub.f32 %v1028, %v1085
        %v1090 = vsub.f32 %v1078, %v1088
        %v1091 = vmul.f32 %v1089, 1.442695
        %v1092 = vpow.pop %v1091
        %v1093 = vmul.f32 %v1090, 1.442695
        %v1094 = vpow.pop %v1093
        %v1095 = vsel %vm546, %v1092, 0.0
        %1096 = vadd.xlane.f32.xlu0 %v1095
        %v1097 = vpop.xlane.xlu0 %1096
        %v1098 = vsel %vm546, %v1094, 0.0
        %1099 = vadd.xlane.f32.xlu0 %v1098
        %v1100 = vpop.xlane.xlu0 %1099
        %v1101 = vrcp.pop %v1097
        %v1102 = vrcp.pop %v1100
        %v1103 = vmul.f32 %v1092, %v1101
        %v1104 = vmul.f32 %v1094, %v1102
        %v1105 = vpack.c.bf16 %v1103, %v1103
        %v1106 = vpack.c.bf16 %v1104, %v1104
        %1107 = vrot.lane.b32.xlu0 %v541, 48
        %v1108 = vpop.permute.xlu0 %1107
        %v1110 = vsel %vm546, %v1105, 0
        %v1113 = vsel %vm671, %v1108, 0
        %1115 = vmatprep.subr.bf16.mxu0 0
        %1116 = vmatpush1.bf16.msra.mxu0 %v1113
        %1117 = vmatprep.subr.bf16.mxu0 0
        %1118 = vmatpush1.bf16.msra.mxu0 0
        %1119 = vmatprep.subr.bf16.mxu0 0
        %1120 = vmatpush1.bf16.msra.mxu0 0
        %1121 = vmatprep.subr.bf16.mxu0 0
        %1122 = vmatpush1.bf16.msra.mxu0 0
        %1123 = vmatprep.subr.bf16.mxu0 0
        %1124 = vmatpush1.bf16.msra.mxu0 0
        %1125 = vmatprep.subr.bf16.mxu0 0
        %1126 = vmatpush1.bf16.msra.mxu0 0
        %1127 = vmatprep.subr.bf16.mxu0 0
        %1128 = vmatpush1.bf16.msra.mxu0 0
        %1129 = vmatprep.subr.bf16.mxu0 0
        %1130 = vmatpush1.bf16.msra.mxu0 0
        %1131 = vmatprep.subr.bf16.mxu0 0
        %1132 = vmatpush1.bf16.msra.mxu0 0
        %1133 = vmatprep.subr.bf16.mxu0 0
        %1134 = vmatpush1.bf16.msra.mxu0 0
        %1135 = vmatprep.subr.bf16.mxu0 0
        %1136 = vmatpush1.bf16.msra.mxu0 0
        %1137 = vmatprep.subr.bf16.mxu0 0
        %1138 = vmatpush1.bf16.msra.mxu0 0
        %1139 = vmatprep.subr.bf16.mxu0 0
        %1140 = vmatpush1.bf16.msra.mxu0 0
        %1141 = vmatprep.subr.bf16.mxu0 0
        %1142 = vmatpush1.bf16.msra.mxu0 0
        %1143 = vmatprep.subr.bf16.mxu0 0
        %1144 = vmatpush1.bf16.msra.mxu0 0
        %1145 = vmatprep.subr.bf16.mxu0 0
        %1146 = vmatpush1.bf16.msra.mxu0 0
        %1147 = vmatprep.mubr.bf16.mxu0 0
        %1148 = vmatmul.mubr.bf16.gmra.mrb[0].mxu0 %v1110
        %v1149 = vpop.f32.mrb[0].mxu0
        %v1150 = vadd.f32 0.0, %v1149
        %v1151 = vpop.f32.mrb[0].mxu0
        %v1152 = vpop.f32.mrb[0].mxu0
        %v1153 = vpop.f32.mrb[0].mxu0
        %1154 = vdwg.mxu0
        %1155 = vrot.lane.b32.xlu0 %v542, 48
        %v1156 = vpop.permute.xlu0 %1155
        %v1158 = vsel %vm546, %v1106, 0
        %v1161 = vsel %vm671, %v1156, 0
        %1163 = vmatprep.subr.bf16.mxu0 0
        %1164 = vmatpush1.bf16.msra.mxu0 %v1161
        %1165 = vmatprep.subr.bf16.mxu0 0
        %1166 = vmatpush1.bf16.msra.mxu0 0
        %1167 = vmatprep.subr.bf16.mxu0 0
        %1168 = vmatpush1.bf16.msra.mxu0 0
        %1169 = vmatprep.subr.bf16.mxu0 0
        %1170 = vmatpush1.bf16.msra.mxu0 0
        %1171 = vmatprep.subr.bf16.mxu0 0
        %1172 = vmatpush1.bf16.msra.mxu0 0
        %1173 = vmatprep.subr.bf16.mxu0 0
        %1174 = vmatpush1.bf16.msra.mxu0 0
        %1175 = vmatprep.subr.bf16.mxu0 0
        %1176 = vmatpush1.bf16.msra.mxu0 0
        %1177 = vmatprep.subr.bf16.mxu0 0
        %1178 = vmatpush1.bf16.msra.mxu0 0
        %1179 = vmatprep.subr.bf16.mxu0 0
        %1180 = vmatpush1.bf16.msra.mxu0 0
        %1181 = vmatprep.subr.bf16.mxu0 0
        %1182 = vmatpush1.bf16.msra.mxu0 0
        %1183 = vmatprep.subr.bf16.mxu0 0
        %1184 = vmatpush1.bf16.msra.mxu0 0
        %1185 = vmatprep.subr.bf16.mxu0 0
        %1186 = vmatpush1.bf16.msra.mxu0 0
        %1187 = vmatprep.subr.bf16.mxu0 0
        %1188 = vmatpush1.bf16.msra.mxu0 0
        %1189 = vmatprep.subr.bf16.mxu0 0
        %1190 = vmatpush1.bf16.msra.mxu0 0
        %1191 = vmatprep.subr.bf16.mxu0 0
        %1192 = vmatpush1.bf16.msra.mxu0 0
        %1193 = vmatprep.subr.bf16.mxu0 0
        %1194 = vmatpush1.bf16.msra.mxu0 0
        %1195 = vmatprep.mubr.bf16.mxu0 0
        %1196 = vmatmul.mubr.bf16.gmra.mrb[0].mxu0 %v1158
        %v1197 = vpop.f32.mrb[0].mxu0
        %v1198 = vadd.f32 0.0, %v1197
        %v1199 = vpop.f32.mrb[0].mxu0
        %v1200 = vpop.f32.mrb[0].mxu0
        %v1201 = vpop.f32.mrb[0].mxu0
        %1202 = vdwg.mxu0
        %1203 = vrot.lane.b32.xlu0 %v541, 104
        %v1204 = vpop.permute.xlu0 %1203
        %1205 = vrot.lane.b32.xlu0 %v541, 72
        %v1206 = vpop.permute.xlu0 %1205
        %v1208 = vsel %vm546, %v1204, 0
        %v1211 = vsel %vm546, %v1206, 0
        %1213 = vmatprep.subr.bf16.mxu0 0
        %1214 = vmatpush1.bf16.xpose.msra.mxu0 %v1211
        %1215 = vmatprep.subr.bf16.mxu0 0
        %1216 = vmatpush1.bf16.xpose.msra.mxu0 0
        %1217 = vmatprep.subr.bf16.mxu0 0
        %1218 = vmatpush1.bf16.xpose.msra.mxu0 0
        %1219 = vmatprep.subr.bf16.mxu0 0
        %1220 = vmatpush1.bf16.xpose.msra.mxu0 0
        %1221 = vmatprep.subr.bf16.mxu0 0
        %1222 = vmatpush1.bf16.xpose.msra.mxu0 0
        %1223 = vmatprep.subr.bf16.mxu0 0
        %1224 = vmatpush1.bf16.xpose.msra.mxu0 0
        %1225 = vmatprep.subr.bf16.mxu0 0
        %1226 = vmatpush1.bf16.xpose.msra.mxu0 0
        %1227 = vmatprep.subr.bf16.mxu0 0
        %1228 = vmatpush1.bf16.xpose.msra.mxu0 0
        %1229 = vmatprep.subr.bf16.mxu0 0
        %1230 = vmatpush1.bf16.xpose.msra.mxu0 0
        %1231 = vmatprep.subr.bf16.mxu0 0
        %1232 = vmatpush1.bf16.xpose.msra.mxu0 0
        %1233 = vmatprep.subr.bf16.mxu0 0
        %1234 = vmatpush1.bf16.xpose.msra.mxu0 0
        %1235 = vmatprep.subr.bf16.mxu0 0
        %1236 = vmatpush1.bf16.xpose.msra.mxu0 0
        %1237 = vmatprep.subr.bf16.mxu0 0
        %1238 = vmatpush1.bf16.xpose.msra.mxu0 0
        %1239 = vmatprep.subr.bf16.mxu0 0
        %1240 = vmatpush1.bf16.xpose.msra.mxu0 0
        %1241 = vmatprep.subr.bf16.mxu0 0
        %1242 = vmatpush1.bf16.xpose.msra.mxu0 0
        %1243 = vmatprep.subr.bf16.mxu0 0
        %1244 = vmatpush1.bf16.xpose.msra.mxu0 0
        %1245 = vmatprep.mubr.bf16.mxu0 0
        %1246 = vmatmul.mubr.bf16.gmra.mrb[0].mxu0 %v1208
        %v1247 = vpop.f32.mrb[0].mxu0
        %v1248 = vadd.f32 0.0, %v1247
        %v1249 = vpop.f32.mrb[0].mxu0
        %v1250 = vpop.f32.mrb[0].mxu0
        %v1251 = vpop.f32.mrb[0].mxu0
        %1252 = vdwg.mxu0
        %1253 = vrot.lane.b32.xlu0 %v542, 104
        %v1254 = vpop.permute.xlu0 %1253
        %1255 = vrot.lane.b32.xlu0 %v542, 72
        %v1256 = vpop.permute.xlu0 %1255
        %v1258 = vsel %vm546, %v1254, 0
        %v1261 = vsel %vm546, %v1256, 0
        %1263 = vmatprep.subr.bf16.mxu0 0
        %1264 = vmatpush1.bf16.xpose.msra.mxu0 %v1261
        %1265 = vmatprep.subr.bf16.mxu0 0
        %1266 = vmatpush1.bf16.xpose.msra.mxu0 0
        %1267 = vmatprep.subr.bf16.mxu0 0
        %1268 = vmatpush1.bf16.xpose.msra.mxu0 0
        %1269 = vmatprep.subr.bf16.mxu0 0
        %1270 = vmatpush1.bf16.xpose.msra.mxu0 0
        %1271 = vmatprep.subr.bf16.mxu0 0
        %1272 = vmatpush1.bf16.xpose.msra.mxu0 0
        %1273 = vmatprep.subr.bf16.mxu0 0
        %1274 = vmatpush1.bf16.xpose.msra.mxu0 0
        %1275 = vmatprep.subr.bf16.mxu0 0
        %1276 = vmatpush1.bf16.xpose.msra.mxu0 0
        %1277 = vmatprep.subr.bf16.mxu0 0
        %1278 = vmatpush1.bf16.xpose.msra.mxu0 0
        %1279 = vmatprep.subr.bf16.mxu0 0
        %1280 = vmatpush1.bf16.xpose.msra.mxu0 0
        %1281 = vmatprep.subr.bf16.mxu0 0
        %1282 = vmatpush1.bf16.xpose.msra.mxu0 0
        %1283 = vmatprep.subr.bf16.mxu0 0
        %1284 = vmatpush1.bf16.xpose.msra.mxu0 0
        %1285 = vmatprep.subr.bf16.mxu0 0
        %1286 = vmatpush1.bf16.xpose.msra.mxu0 0
        %1287 = vmatprep.subr.bf16.mxu0 0
        %1288 = vmatpush1.bf16.xpose.msra.mxu0 0
        %1289 = vmatprep.subr.bf16.mxu0 0
        %1290 = vmatpush1.bf16.xpose.msra.mxu0 0
        %1291 = vmatprep.subr.bf16.mxu0 0
        %1292 = vmatpush1.bf16.xpose.msra.mxu0 0
        %1293 = vmatprep.subr.bf16.mxu0 0
        %1294 = vmatpush1.bf16.xpose.msra.mxu0 0
        %1295 = vmatprep.mubr.bf16.mxu0 0
        %1296 = vmatmul.mubr.bf16.gmra.mrb[0].mxu0 %v1258
        %v1297 = vpop.f32.mrb[0].mxu0
        %v1298 = vadd.f32 0.0, %v1297
        %v1299 = vpop.f32.mrb[0].mxu0
        %v1300 = vpop.f32.mrb[0].mxu0
        %v1301 = vpop.f32.mrb[0].mxu0
        %1302 = vdwg.mxu0
        %v1303 = vsel %vm546, %v1248, -inf
        %1304 = vmax.xlane.f32.xlu0 %v1303
        %v1305 = vpop.xlane.xlu0 %1304
        %v1306 = vsel %vm546, %v1298, -inf
        %1307 = vmax.xlane.f32.xlu0 %v1306
        %v1308 = vpop.xlane.xlu0 %1307
        %v1309 = vsub.f32 %v1248, %v1305
        %v1310 = vsub.f32 %v1298, %v1308
        %v1311 = vmul.f32 %v1309, 1.442695
        %v1312 = vpow.pop %v1311
        %v1313 = vmul.f32 %v1310, 1.442695
        %v1314 = vpow.pop %v1313
        %v1315 = vsel %vm546, %v1312, 0.0
        %1316 = vadd.xlane.f32.xlu0 %v1315
        %v1317 = vpop.xlane.xlu0 %1316
        %v1318 = vsel %vm546, %v1314, 0.0
        %1319 = vadd.xlane.f32.xlu0 %v1318
        %v1320 = vpop.xlane.xlu0 %1319
        %v1321 = vrcp.pop %v1317
        %v1322 = vrcp.pop %v1320
        %v1323 = vmul.f32 %v1312, %v1321
        %v1324 = vmul.f32 %v1314, %v1322
        %v1325 = vpack.c.bf16 %v1323, %v1323
        %v1326 = vpack.c.bf16 %v1324, %v1324
        %1327 = vrot.lane.b32.xlu0 %v541, 40
        %v1328 = vpop.permute.xlu0 %1327
        %v1330 = vsel %vm546, %v1325, 0
        %v1333 = vsel %vm671, %v1328, 0
        %1335 = vmatprep.subr.bf16.mxu0 0
        %1336 = vmatpush1.bf16.msra.mxu0 %v1333
        %1337 = vmatprep.subr.bf16.mxu0 0
        %1338 = vmatpush1.bf16.msra.mxu0 0
        %1339 = vmatprep.subr.bf16.mxu0 0
        %1340 = vmatpush1.bf16.msra.mxu0 0
        %1341 = vmatprep.subr.bf16.mxu0 0
        %1342 = vmatpush1.bf16.msra.mxu0 0
        %1343 = vmatprep.subr.bf16.mxu0 0
        %1344 = vmatpush1.bf16.msra.mxu0 0
        %1345 = vmatprep.subr.bf16.mxu0 0
        %1346 = vmatpush1.bf16.msra.mxu0 0
        %1347 = vmatprep.subr.bf16.mxu0 0
        %1348 = vmatpush1.bf16.msra.mxu0 0
        %1349 = vmatprep.subr.bf16.mxu0 0
        %1350 = vmatpush1.bf16.msra.mxu0 0
        %1351 = vmatprep.subr.bf16.mxu0 0
        %1352 = vmatpush1.bf16.msra.mxu0 0
        %1353 = vmatprep.subr.bf16.mxu0 0
        %1354 = vmatpush1.bf16.msra.mxu0 0
        %1355 = vmatprep.subr.bf16.mxu0 0
        %1356 = vmatpush1.bf16.msra.mxu0 0
        %1357 = vmatprep.subr.bf16.mxu0 0
        %1358 = vmatpush1.bf16.msra.mxu0 0
        %1359 = vmatprep.subr.bf16.mxu0 0
        %1360 = vmatpush1.bf16.msra.mxu0 0
        %1361 = vmatprep.subr.bf16.mxu0 0
        %1362 = vmatpush1.bf16.msra.mxu0 0
        %1363 = vmatprep.subr.bf16.mxu0 0
        %1364 = vmatpush1.bf16.msra.mxu0 0
        %1365 = vmatprep.subr.bf16.mxu0 0
        %1366 = vmatpush1.bf16.msra.mxu0 0
        %1367 = vmatprep.mubr.bf16.mxu0 0
        %1368 = vmatmul.mubr.bf16.gmra.mrb[0].mxu0 %v1330
        %v1369 = vpop.f32.mrb[0].mxu0
        %v1370 = vadd.f32 0.0, %v1369
        %v1371 = vpop.f32.mrb[0].mxu0
        %v1372 = vpop.f32.mrb[0].mxu0
        %v1373 = vpop.f32.mrb[0].mxu0
        %1374 = vdwg.mxu0
        %1375 = vrot.lane.b32.xlu0 %v542, 40
        %v1376 = vpop.permute.xlu0 %1375
        %v1378 = vsel %vm546, %v1326, 0
        %v1381 = vsel %vm671, %v1376, 0
        %1383 = vmatprep.subr.bf16.mxu0 0
        %1384 = vmatpush1.bf16.msra.mxu0 %v1381
        %1385 = vmatprep.subr.bf16.mxu0 0
        %1386 = vmatpush1.bf16.msra.mxu0 0
        %1387 = vmatprep.subr.bf16.mxu0 0
        %1388 = vmatpush1.bf16.msra.mxu0 0
        %1389 = vmatprep.subr.bf16.mxu0 0
        %1390 = vmatpush1.bf16.msra.mxu0 0
        %1391 = vmatprep.subr.bf16.mxu0 0
        %1392 = vmatpush1.bf16.msra.mxu0 0
        %1393 = vmatprep.subr.bf16.mxu0 0
        %1394 = vmatpush1.bf16.msra.mxu0 0
        %1395 = vmatprep.subr.bf16.mxu0 0
        %1396 = vmatpush1.bf16.msra.mxu0 0
        %1397 = vmatprep.subr.bf16.mxu0 0
        %1398 = vmatpush1.bf16.msra.mxu0 0
        %1399 = vmatprep.subr.bf16.mxu0 0
        %1400 = vmatpush1.bf16.msra.mxu0 0
        %1401 = vmatprep.subr.bf16.mxu0 0
        %1402 = vmatpush1.bf16.msra.mxu0 0
        %1403 = vmatprep.subr.bf16.mxu0 0
        %1404 = vmatpush1.bf16.msra.mxu0 0
        %1405 = vmatprep.subr.bf16.mxu0 0
        %1406 = vmatpush1.bf16.msra.mxu0 0
        %1407 = vmatprep.subr.bf16.mxu0 0
        %1408 = vmatpush1.bf16.msra.mxu0 0
        %1409 = vmatprep.subr.bf16.mxu0 0
        %1410 = vmatpush1.bf16.msra.mxu0 0
        %1411 = vmatprep.subr.bf16.mxu0 0
        %1412 = vmatpush1.bf16.msra.mxu0 0
        %1413 = vmatprep.subr.bf16.mxu0 0
        %1414 = vmatpush1.bf16.msra.mxu0 0
        %1415 = vmatprep.mubr.bf16.mxu0 0
        %1416 = vmatmul.mubr.bf16.gmra.mrb[0].mxu0 %v1378
        %v1417 = vpop.f32.mrb[0].mxu0
        %v1418 = vadd.f32 0.0, %v1417
        %v1419 = vpop.f32.mrb[0].mxu0
        %v1420 = vpop.f32.mrb[0].mxu0
        %v1421 = vpop.f32.mrb[0].mxu0
        %1422 = vdwg.mxu0
        %1425 = vrot.lane.b32.xlu0 %v930, 8
        %v1426 = vpop.permute.xlu0 %1425
        %1427 = vrot.lane.b32.xlu0 %v978, 8
        %v1428 = vpop.permute.xlu0 %1427
        %1433 = vrot.lane.b32.xlu0 %v1150, 16
        %v1434 = vpop.permute.xlu0 %1433
        %1435 = vrot.lane.b32.xlu0 %v1198, 16
        %v1436 = vpop.permute.xlu0 %1435
        %1441 = vrot.lane.b32.xlu0 %v1370, 24
        %v1442 = vpop.permute.xlu0 %1441
        %1443 = vrot.lane.b32.xlu0 %v1418, 24
        %v1444 = vpop.permute.xlu0 %1443
        %v1447 = vsel %vm546, %v710, %v1426
        %v1448 = vsel %vm546, %v758, %v1428
        %vm1449 = vcmask 130048
        %v1450 = vsel %vm1449, %v1447, %v1434
        %v1451 = vsel %vm1449, %v1448, %v1436
        %vm1452 = vcmask 195584
        %v1453 = vsel %vm1452, %v1450, %v1442
        %v1454 = vsel %vm1452, %v1451, %v1444
        %v1455 = vpack.c.bf16 %v1454, %v1453
        %v1456 = vld [vmem:[%s398] sm:$0xf]
        %v1457 = vld [vmem:[%s398 + $0x4] sm:$0xf]
        %v1458 = vld [vmem:[%s398 + $0x8] sm:$0xf]
        %v1459 = vld [vmem:[%s398 + $0xc] sm:$0xf]
        %v1460 = vld [vmem:[%s449] sm:$0x1]
        %v1462 = vlaneseq
        %v1463 = vshrl.u32 %v1462, 7
        %v1464 = vsub.s32 0, %v1463
        %v1465 = vrot.slane %v1460, %v1464
        %v1471 = vunpack.c.l.b16 %v1456
        %v1472 = vunpack.c.l.b16 %v1457
        %v1473 = vunpack.c.l.b16 %v1458
        %v1474 = vunpack.c.l.b16 %v1459
        %v1475 = vpack.c.b16 %v1472, %v1471
        %v1476 = vpack.c.b16 %v1474, %v1473
        %v1480 = vsel %vm496, %v1455, 0
        %1482 = vmatprep.subr.bf16.mxu0 0
        %1483 = vmatpush1.bf16.msra.mxu0 %v1475
        %1484 = vmatprep.subr.bf16.mxu0 0
        %1485 = vmatpush1.bf16.msra.mxu0 %v1476
        %1486 = vmatprep.subr.bf16.mxu0 0
        %1487 = vmatpush1.bf16.msra.mxu0 0
        %1488 = vmatprep.subr.bf16.mxu0 0
        %1489 = vmatpush1.bf16.msra.mxu0 0
        %1490 = vmatprep.subr.bf16.mxu0 0
        %1491 = vmatpush1.bf16.msra.mxu0 0
        %1492 = vmatprep.subr.bf16.mxu0 0
        %1493 = vmatpush1.bf16.msra.mxu0 0
        %1494 = vmatprep.subr.bf16.mxu0 0
        %1495 = vmatpush1.bf16.msra.mxu0 0
        %1496 = vmatprep.subr.bf16.mxu0 0
        %1497 = vmatpush1.bf16.msra.mxu0 0
        %1498 = vmatprep.subr.bf16.mxu0 0
        %1499 = vmatpush1.bf16.msra.mxu0 0
        %1500 = vmatprep.subr.bf16.mxu0 0
        %1501 = vmatpush1.bf16.msra.mxu0 0
        %1502 = vmatprep.subr.bf16.mxu0 0
        %1503 = vmatpush1.bf16.msra.mxu0 0
        %1504 = vmatprep.subr.bf16.mxu0 0
        %1505 = vmatpush1.bf16.msra.mxu0 0
        %1506 = vmatprep.subr.bf16.mxu0 0
        %1507 = vmatpush1.bf16.msra.mxu0 0
        %1508 = vmatprep.subr.bf16.mxu0 0
        %1509 = vmatpush1.bf16.msra.mxu0 0
        %1510 = vmatprep.subr.bf16.mxu0 0
        %1511 = vmatpush1.bf16.msra.mxu0 0
        %1512 = vmatprep.subr.bf16.mxu0 0
        %1513 = vmatpush1.bf16.msra.mxu0 0
        %1514 = vmatprep.mubr.bf16.mxu0 0
        %1515 = vmatmul.mubr.bf16.gmra.mrb[0].mxu0 %v1480
        %v1516 = vpop.f32.mrb[0].mxu0
        %v1517 = vadd.f32 %v1465, %v1516
        %v1518 = vpop.f32.mrb[0].mxu0
        %v1519 = vpop.f32.mrb[0].mxu0
        %v1520 = vadd.f32 %v1465, %v1519
        %v1521 = vpop.f32.mrb[0].mxu0
        %1522 = vdwg.mxu0
        %v1523 = vadd.f32 %v1517, %v470
        %v1524 = vadd.f32 %v1520, %v471
        %v1525 = vsel %vm496, %v1523, 0.0
        %1526 = vadd.xlane.f32.xlu0 %v1525
        %v1527 = vpop.xlane.xlu0 %1526
        %v1528 = vsel %vm496, %v1524, 0.0
        %1529 = vadd.xlane.f32.xlu0 %v1528
        %v1530 = vpop.xlane.xlu0 %1529
        %v1531 = vrcp.pop 32.0
        %v1532 = vmul.f32 %v1527, %v1531
        %v1533 = vmul.f32 %v1530, %v1531
        %v1534 = vsub.f32 %v1523, %v1532
        %v1535 = vsub.f32 %v1524, %v1533
        %v1536 = vmul.f32 %v1534, %v1534
        %v1537 = vmul.f32 %v1535, %v1535
        %v1538 = vsel %vm496, %v1536, 0.0
        %1539 = vadd.xlane.f32.xlu0 %v1538
        %v1540 = vpop.xlane.xlu0 %1539
        %v1541 = vsel %vm496, %v1537, 0.0
        %1542 = vadd.xlane.f32.xlu0 %v1541
        %v1543 = vpop.xlane.xlu0 %1542
        %v1544 = vmul.f32 %v1540, %v1531
        %v1545 = vmul.f32 %v1543, %v1531
        %v1546 = vadd.f32 %v1544, 1e-12
        %v1547 = vadd.f32 %v1545, 1e-12
        %v1548 = vrsqrt.pop %v1546
        %v1549 = vrsqrt.pop %v1547
        %v1550 = vmul.f32 %v1534, %v1548
        %v1551 = vmul.f32 %v1535, %v1549
        %v1552 = vld [vmem:[%s452] sm:$0x1]
        %v1554 = vlaneseq
        %v1555 = vshrl.u32 %v1554, 7
        %v1556 = vsub.s32 0, %v1555
        %v1557 = vrot.slane %v1552, %v1556
        %v1559 = vmul.f32 %v1557, %v1550
        %v1560 = vmul.f32 %v1557, %v1551
        %v1561 = vld [vmem:[%s455] sm:$0x1]
        %v1563 = vlaneseq
        %v1564 = vshrl.u32 %v1563, 7
        %v1565 = vsub.s32 0, %v1564
        %v1566 = vrot.slane %v1561, %v1565
        %v1568 = vadd.f32 %v1559, %v1566
        %v1569 = vadd.f32 %v1560, %v1566
        %1570 = vst.msk [vmem:[#allocation9] sm:$0xff] %vm496, %v1568
        %1571 = vst.msk [vmem:[#allocation9 + $0x8] sm:$0xff] %vm496, %v1569
        // Predicated region
        $region73: #{tpu_custom_call.1} parent=51 // pred_check
          %p1572 = pneg %p255
        $region74: #{tpu_custom_call.1} parent=51 // pred_check_branch
          %1574 = sbr.rel (%p1572) target = $region76
        $region75: #{tpu_custom_call.1} parent=51 // pred_region
          %s1575 = smul.u32 2, %s26
          %s1577 = ssub.s32 256, 256
          %1578 = vsyncadd [#allocation4], %s1577
          %s1579 = smul.addr %s1575, 128
          %s1580 = scalar_lea.hbm %s8, %s1579
          %s1581 = sshll.u32 [#allocation9], 4
          %s1582 = int_to_ptr.vmem [resolvable:$true] %s1581
          %1587 = dma.vmem_to_hbm [thread:$0]  %s1582, 256, %s1580, [#allocation4], 128, 128, 8
        $region76: #{tpu_custom_call.1} parent=51 // pred_fallthru
          _
        // Predicated region
        $region77: #{tpu_custom_call.1} parent=51 // pred_check
          %p1588 = pneg %p255
        $region78: #{tpu_custom_call.1} parent=51 // pred_check_branch
          %1590 = sbr.rel (%p1588) target = $region80
        $region79: #{tpu_custom_call.1} parent=51 // pred_region
          %1591 = dma.done [#allocation4], 256
        $region80: #{tpu_custom_call.1} parent=51 // pred_fallthru
          _
      $region52: #{tpu_custom_call.1} parent=5 // pred_fallthru
        _
      %p1592 = scmp.le.s32.totalorder 2, %s17
      // Predicated region
      $region81: #{tpu_custom_call.1} parent=5 // pred_check
        %p1593 = pneg %p1592
      $region82: #{tpu_custom_call.1} parent=5 // pred_check_branch
        %1595 = sbr.rel (%p1593) target = $region84
      $region83: #{tpu_custom_call.1} parent=5 // pred_region
        %s1596 = ssub.s32 %s17, 2
      $region84: #{tpu_custom_call.1} parent=5 // pred_fallthru
        _
    $region6: #{tpu_custom_call.1} parent=1 // loop_footer
      %s21 = sadd.s32 1, %s17
    $region7: #{tpu_custom_call.1} parent=1 // loop_footer_branch
      %16 = sbr.rel target = $region3
    $region8: #{tpu_custom_call.1} parent=1 // loop_exit
      _
    %1597 = vsyncpa [#allocation3], 1
    %s1598 = scalar_lea.sflag [#allocation3], 1
    %1599 = vsyncpa %s1598, 1
    %1600 = vsyncpa [#allocation6], 1
    %1601 = vsyncpa [#allocation4], 1
    %s1602 = scalar_lea.sflag [#allocation4], 1
    %1603 = vsyncpa %s1602, 1

</llo_original>
